<compile_context>
chip_gen: v6e
topology: v6e:2x2x1
jax: 0.10.0
libtpu: 0.0.40
codegen_flags: <defaults>
</compile_context>

<pallas_src>
import jax
import jax.numpy as jnp
from jax.experimental import pallas as pl
from jax.experimental.pallas import tpu as pltpu
import numpy as np


def _sigmoid(z):
    # sigmoid(z) = 0.5 * tanh(0.5*z) + 0.5 : single EUP tanh + VPU mul/add,
    # and numerically matches the exp form well within the 1e-5 tolerance.
    return 0.5 * jnp.tanh(0.5 * z) + 0.5


def cnn_bilstm_kernel(x_ref, w1_ref, b1_ref, wih_ref, bg_ref,
                      wfc_f_ref, wfc_r_ref, bfc_ref, out_ref):
    """One batch-tile of the CNNBiLSTM forward.

    wih_ref / bg_ref hold the 6 live gate blocks (forget gates pruned):
        [i_fwd, g_fwd, o_fwd, i_rev, g_rev, o_rev], each H wide (H = 128).
    """
    H = wfc_f_ref.shape[0]

    x = x_ref[...]                                                     # (TB, Dp)
    cnn = _sigmoid(jnp.dot(x, w1_ref[...],
                           preferred_element_type=jnp.float32) + b1_ref[...])

    def gate(idx):
        # Static, lane-aligned H-wide slice of the resident fused weight:
        # (TB, C) @ (C, H) -> (TB, H); result stays in vregs (no (TB,6H) spill).
        w = wih_ref[:, idx * H:(idx + 1) * H]
        b = bg_ref[:, idx * H:(idx + 1) * H]
        return jnp.dot(cnn, w, preferred_element_type=jnp.float32) + b

    # Forward direction (c0 == 0 => c = i*g; forget gate never computed).
    i_f = _sigmoid(gate(0))
    g_f = jnp.tanh(gate(1))
    o_f = _sigmoid(gate(2))
    h_f = o_f * jnp.tanh(i_f * g_f)                                    # (TB, H)

    # Backward direction (same single timestep since seq_len == 1).
    i_r = _sigmoid(gate(3))
    g_r = jnp.tanh(gate(4))
    o_r = _sigmoid(gate(5))
    h_r = o_r * jnp.tanh(i_r * g_r)                                    # (TB, H)

    # Final fc without any lane-axis concat; output block is lane-dense (P=128).
    logits = (jnp.dot(h_f, wfc_f_ref[...], preferred_element_type=jnp.float32)
              + jnp.dot(h_r, wfc_r_ref[...], preferred_element_type=jnp.float32)
              + bfc_ref[...])
    out_ref[...] = _sigmoid(logits)


def cnn_bilstm_forward(x, params, *, batch_tile=256):
    B, D = x.shape
    H = params["whh_f"].shape[0]
    C = params["w1"].shape[1]
    out_dim = params["w_fc"].shape[1]

    # ---- offline prep: prune forget gates, fuse directions, fold biases ----
    def prune_gates(w):            # (*, 4H) -> (*, 3H): keep i, g, o
        return jnp.concatenate([w[..., :H], w[..., 2 * H:3 * H],
                                w[..., 3 * H:4 * H]], axis=-1)

    wih = jnp.concatenate([prune_gates(params["wih_f"]),
                           prune_gates(params["wih_r"])], axis=1)      # (C, 6H)
    b_gate = jnp.concatenate(
        [prune_gates(params["bih_f"] + params["bhh_f"]),
         prune_gates(params["bih_r"] + params["bhh_r"])], axis=1)      # (1, 6H)

    # Lane-dense padded output width (masked 1-lane stores are the slowest path).
    P = 128 * pl.cdiv(out_dim, 128)
    pad_n = P - out_dim
    wfc_f = jnp.pad(params["w_fc"][:H], ((0, 0), (0, pad_n)))          # (H, P)
    wfc_r = jnp.pad(params["w_fc"][H:], ((0, 0), (0, pad_n)))          # (H, P)
    bfc = jnp.pad(params["b_fc"], ((0, 0), (0, pad_n)))                # (1, P)

    # Zero-pad the contraction dim D to a lane-aligned multiple of 128.
    Dp = 128 * pl.cdiv(D, 128)
    w1 = jnp.pad(params["w1"], ((0, Dp - D), (0, 0)))                  # (Dp, C)

    # ---- batch tiling: >=2 grid steps so v7x's second TC gets work ----
    def _round8(n):
        return max(8, 8 * ((n + 7) // 8))

    tb = _round8(min(batch_tile, B))
    n_tiles = -(-B // tb)
    if n_tiles == 1 and B > 8:
        tb = _round8(-(-B // 2))
        n_tiles = -(-B // tb)
    Bp = tb * n_tiles
    xp = jnp.pad(x, ((0, Bp - B), (0, Dp - D)))                        # (Bp, Dp)

    def const(i):
        return (0, 0)

    out = pl.pallas_call(
        cnn_bilstm_kernel,
        out_shape=jax.ShapeDtypeStruct((Bp, P), jnp.float32),
        grid_spec=pltpu.PrefetchScalarGridSpec(
            num_scalar_prefetch=0,
            grid=(n_tiles,),
            in_specs=[
                pl.BlockSpec((tb, Dp), lambda i: (i, 0)),   # x: tiled over batch
                pl.BlockSpec((Dp, C), const),               # w1 (resident)
                pl.BlockSpec((1, C), const),                # b1
                pl.BlockSpec((C, 6 * H), const),            # fused pruned W_ih
                pl.BlockSpec((1, 6 * H), const),            # fused pruned gate bias
                pl.BlockSpec((H, P), const),                # w_fc (fwd half)
                pl.BlockSpec((H, P), const),                # w_fc (bwd half)
                pl.BlockSpec((1, P), const),                # b_fc (padded)
            ],
            out_specs=pl.BlockSpec((tb, P), lambda i: (i, 0)),
        ),
        compiler_params=pltpu.CompilerParams(
            dimension_semantics=("parallel",)),
    )(xp, w1, params["b1"], wih, b_gate, wfc_f, wfc_r, bfc)

    return out[:B, :out_dim]


def init_params(key, input_dim, cnn_output_dim, lstm_hidden_dim, output_dim):
    """Deterministic PyTorch-default-style uniform init (synthetic weights)."""
    ks = jax.random.split(key, 12)
    H = lstm_hidden_dim

    def u(k, shape, fan_in):
        bound = 1.0 / np.sqrt(fan_in)
        return jax.random.uniform(k, shape, jnp.float32, -bound, bound)

    return dict(
        w1=u(ks[0], (input_dim, cnn_output_dim), input_dim),
        b1=u(ks[1], (1, cnn_output_dim), input_dim),
        wih_f=u(ks[2], (cnn_output_dim, 4 * H), H),
        whh_f=u(ks[3], (H, 4 * H), H),
        bih_f=u(ks[4], (1, 4 * H), H),
        bhh_f=u(ks[5], (1, 4 * H), H),
        wih_r=u(ks[6], (cnn_output_dim, 4 * H), H),
        whh_r=u(ks[7], (H, 4 * H), H),
        bih_r=u(ks[8], (1, 4 * H), H),
        bhh_r=u(ks[9], (1, 4 * H), H),
        w_fc=u(ks[10], (2 * H, output_dim), 2 * H),
        b_fc=u(ks[11], (1, output_dim), 2 * H),
    )


def reference_forward(x, p):
    """Pure-JAX reference mirroring the PyTorch forward (including dead terms)."""
    cnn = jax.nn.sigmoid(x @ p["w1"] + p["b1"])
    H = p["whh_f"].shape[0]
    B = x.shape[0]

    def step(xt, wih, whh, bih, bhh):
        h0 = jnp.zeros((B, H), jnp.float32)
        c0 = jnp.zeros((B, H), jnp.float32)
        gates = xt @ wih + bih + h0 @ whh + bhh
        i, f, g, o = (gates[:, :H], gates[:, H:2 * H],
                      gates[:, 2 * H:3 * H], gates[:, 3 * H:])
        i, f, o = jax.nn.sigmoid(i), jax.nn.sigmoid(f), jax.nn.sigmoid(o)
        g = jnp.tanh(g)
        c = f * c0 + i * g
        return o * jnp.tanh(c)

    h = jnp.concatenate(
        [step(cnn, p["wih_f"], p["whh_f"], p["bih_f"], p["bhh_f"]),
         step(cnn, p["wih_r"], p["whh_r"], p["bih_r"], p["bhh_r"])], axis=-1)
    return jax.nn.sigmoid(h @ p["w_fc"] + p["b_fc"])


if __name__ == "__main__":
    # Shapes implied by the module's setup code: SVD n_components=100 -> input_dim,
    # cnn_output_dim=128, lstm_hidden_dim=128, output_dim=1.  Batch kept small.
    batch, input_dim = 128, 100
    cnn_output_dim, lstm_hidden_dim, output_dim = 128, 128, 1

    key = jax.random.PRNGKey(0)
    kx, kp = jax.random.split(key)
    x = jax.random.normal(kx, (batch, input_dim), jnp.float32)
    params = init_params(kp, input_dim, cnn_output_dim, lstm_hidden_dim, output_dim)

    out = cnn_bilstm_forward(x, params)
    out = jax.block_until_ready(out)

    ref = reference_forward(x, params)
    np.testing.assert_allclose(np.asarray(out), np.asarray(ref), rtol=1e-5, atol=1e-5)

    print("KERNEL_OK")
</pallas_src>

<mosaic_0001>
module attributes {stable_mosaic.version = 11 : i64} {
  func.func @cnn_bilstm_kernel(%arg0: i32, %arg1: memref<64x128xf32, #tpu.memory_space<vmem>>, %arg2: memref<128x128xf32, #tpu.memory_space<vmem>>, %arg3: memref<1x128xf32, #tpu.memory_space<vmem>>, %arg4: memref<128x768xf32, #tpu.memory_space<vmem>>, %arg5: memref<1x768xf32, #tpu.memory_space<vmem>>, %arg6: memref<128x128xf32, #tpu.memory_space<vmem>>, %arg7: memref<128x128xf32, #tpu.memory_space<vmem>>, %arg8: memref<1x128xf32, #tpu.memory_space<vmem>>, %arg9: memref<64x128xf32, #tpu.memory_space<vmem>>) attributes {dimension_semantics = [#tpu.dimension_semantics<parallel>], iteration_bounds = array<i64: 2>, scalar_prefetch = 0 : i64, scratch_operands = 0 : i64, tpu.core_type = #tpu.core_type<tc>, window_params = [{transform_indices = @transform_0, window_bounds = array<i64: 64, 128>}, {pipeline_mode = #tpu.pipeline_mode<synchronous>, transform_indices = @transform_1, window_bounds = array<i64: 128, 128>}, {pipeline_mode = #tpu.pipeline_mode<synchronous>, transform_indices = @transform_2, window_bounds = array<i64: 1, 128>}, {pipeline_mode = #tpu.pipeline_mode<synchronous>, transform_indices = @transform_3, window_bounds = array<i64: 128, 768>}, {pipeline_mode = #tpu.pipeline_mode<synchronous>, transform_indices = @transform_4, window_bounds = array<i64: 1, 768>}, {pipeline_mode = #tpu.pipeline_mode<synchronous>, transform_indices = @transform_5, window_bounds = array<i64: 128, 128>}, {pipeline_mode = #tpu.pipeline_mode<synchronous>, transform_indices = @transform_6, window_bounds = array<i64: 128, 128>}, {pipeline_mode = #tpu.pipeline_mode<synchronous>, transform_indices = @transform_7, window_bounds = array<i64: 1, 128>}, {transform_indices = @transform_8, window_bounds = array<i64: 64, 128>}]} {
    %c0 = arith.constant 0 : index
    %c0_0 = arith.constant 0 : index
    %0 = vector.load %arg1[%c0, %c0_0] : memref<64x128xf32, #tpu.memory_space<vmem>>, vector<64x128xf32>
    %c0_1 = arith.constant 0 : index
    %c0_2 = arith.constant 0 : index
    %1 = vector.load %arg2[%c0_1, %c0_2] : memref<128x128xf32, #tpu.memory_space<vmem>>, vector<128x128xf32>
    %cst = arith.constant dense<0.000000e+00> : vector<64x128xf32>
    %2 = tpu.matmul %0, %1, %cst {dimension_numbers = #tpu.dot_dimension_numbers<[1], [0], [0], [1], [0, 0, 1, 1], [], []>} : vector<64x128xf32>, vector<128x128xf32>, vector<64x128xf32> -> vector<64x128xf32>
    %c0_3 = arith.constant 0 : index
    %c0_4 = arith.constant 0 : index
    %3 = vector.load %arg3[%c0_3, %c0_4] : memref<1x128xf32, #tpu.memory_space<vmem>>, vector<1x128xf32>
    %4 = vector.broadcast %3 : vector<1x128xf32> to vector<64x128xf32>
    %5 = arith.addf %2, %4 : vector<64x128xf32>
    %cst_5 = arith.constant 5.000000e-01 : f32
    %6 = vector.broadcast %cst_5 : f32 to vector<64x128xf32>
    %7 = arith.mulf %6, %5 : vector<64x128xf32>
    %8 = math.tanh %7 : vector<64x128xf32>
    %cst_6 = arith.constant 5.000000e-01 : f32
    %9 = vector.broadcast %cst_6 : f32 to vector<64x128xf32>
    %10 = arith.mulf %9, %8 : vector<64x128xf32>
    %cst_7 = arith.constant 5.000000e-01 : f32
    %11 = vector.broadcast %cst_7 : f32 to vector<64x128xf32>
    %12 = arith.addf %10, %11 : vector<64x128xf32>
    %c0_8 = arith.constant 0 : index
    %c0_9 = arith.constant 0 : index
    %13 = vector.load %arg4[%c0_8, %c0_9] : memref<128x768xf32, #tpu.memory_space<vmem>>, vector<128x128xf32>
    %c0_10 = arith.constant 0 : index
    %c0_11 = arith.constant 0 : index
    %14 = vector.load %arg5[%c0_10, %c0_11] : memref<1x768xf32, #tpu.memory_space<vmem>>, vector<1x128xf32>
    %cst_12 = arith.constant dense<0.000000e+00> : vector<64x128xf32>
    %15 = tpu.matmul %12, %13, %cst_12 {dimension_numbers = #tpu.dot_dimension_numbers<[1], [0], [0], [1], [0, 0, 1, 1], [], []>} : vector<64x128xf32>, vector<128x128xf32>, vector<64x128xf32> -> vector<64x128xf32>
    %16 = vector.broadcast %14 : vector<1x128xf32> to vector<64x128xf32>
    %17 = arith.addf %15, %16 : vector<64x128xf32>
    %cst_13 = arith.constant 5.000000e-01 : f32
    %18 = vector.broadcast %cst_13 : f32 to vector<64x128xf32>
    %19 = arith.mulf %18, %17 : vector<64x128xf32>
    %20 = math.tanh %19 : vector<64x128xf32>
    %cst_14 = arith.constant 5.000000e-01 : f32
    %21 = vector.broadcast %cst_14 : f32 to vector<64x128xf32>
    %22 = arith.mulf %21, %20 : vector<64x128xf32>
    %cst_15 = arith.constant 5.000000e-01 : f32
    %23 = vector.broadcast %cst_15 : f32 to vector<64x128xf32>
    %24 = arith.addf %22, %23 : vector<64x128xf32>
    %c0_16 = arith.constant 0 : index
    %c128 = arith.constant 128 : index
    %25 = vector.load %arg4[%c0_16, %c128] : memref<128x768xf32, #tpu.memory_space<vmem>>, vector<128x128xf32>
    %c0_17 = arith.constant 0 : index
    %c128_18 = arith.constant 128 : index
    %26 = vector.load %arg5[%c0_17, %c128_18] : memref<1x768xf32, #tpu.memory_space<vmem>>, vector<1x128xf32>
    %cst_19 = arith.constant dense<0.000000e+00> : vector<64x128xf32>
    %27 = tpu.matmul %12, %25, %cst_19 {dimension_numbers = #tpu.dot_dimension_numbers<[1], [0], [0], [1], [0, 0, 1, 1], [], []>} : vector<64x128xf32>, vector<128x128xf32>, vector<64x128xf32> -> vector<64x128xf32>
    %28 = vector.broadcast %26 : vector<1x128xf32> to vector<64x128xf32>
    %29 = arith.addf %27, %28 : vector<64x128xf32>
    %30 = math.tanh %29 : vector<64x128xf32>
    %c0_20 = arith.constant 0 : index
    %c256 = arith.constant 256 : index
    %31 = vector.load %arg4[%c0_20, %c256] : memref<128x768xf32, #tpu.memory_space<vmem>>, vector<128x128xf32>
    %c0_21 = arith.constant 0 : index
    %c256_22 = arith.constant 256 : index
    %32 = vector.load %arg5[%c0_21, %c256_22] : memref<1x768xf32, #tpu.memory_space<vmem>>, vector<1x128xf32>
    %cst_23 = arith.constant dense<0.000000e+00> : vector<64x128xf32>
    %33 = tpu.matmul %12, %31, %cst_23 {dimension_numbers = #tpu.dot_dimension_numbers<[1], [0], [0], [1], [0, 0, 1, 1], [], []>} : vector<64x128xf32>, vector<128x128xf32>, vector<64x128xf32> -> vector<64x128xf32>
    %34 = vector.broadcast %32 : vector<1x128xf32> to vector<64x128xf32>
    %35 = arith.addf %33, %34 : vector<64x128xf32>
    %cst_24 = arith.constant 5.000000e-01 : f32
    %36 = vector.broadcast %cst_24 : f32 to vector<64x128xf32>
    %37 = arith.mulf %36, %35 : vector<64x128xf32>
    %38 = math.tanh %37 : vector<64x128xf32>
    %cst_25 = arith.constant 5.000000e-01 : f32
    %39 = vector.broadcast %cst_25 : f32 to vector<64x128xf32>
    %40 = arith.mulf %39, %38 : vector<64x128xf32>
    %cst_26 = arith.constant 5.000000e-01 : f32
    %41 = vector.broadcast %cst_26 : f32 to vector<64x128xf32>
    %42 = arith.addf %40, %41 : vector<64x128xf32>
    %43 = arith.mulf %24, %30 : vector<64x128xf32>
    %44 = math.tanh %43 : vector<64x128xf32>
    %45 = arith.mulf %42, %44 : vector<64x128xf32>
    %c0_27 = arith.constant 0 : index
    %c384 = arith.constant 384 : index
    %46 = vector.load %arg4[%c0_27, %c384] : memref<128x768xf32, #tpu.memory_space<vmem>>, vector<128x128xf32>
    %c0_28 = arith.constant 0 : index
    %c384_29 = arith.constant 384 : index
    %47 = vector.load %arg5[%c0_28, %c384_29] : memref<1x768xf32, #tpu.memory_space<vmem>>, vector<1x128xf32>
    %cst_30 = arith.constant dense<0.000000e+00> : vector<64x128xf32>
    %48 = tpu.matmul %12, %46, %cst_30 {dimension_numbers = #tpu.dot_dimension_numbers<[1], [0], [0], [1], [0, 0, 1, 1], [], []>} : vector<64x128xf32>, vector<128x128xf32>, vector<64x128xf32> -> vector<64x128xf32>
    %49 = vector.broadcast %47 : vector<1x128xf32> to vector<64x128xf32>
    %50 = arith.addf %48, %49 : vector<64x128xf32>
    %cst_31 = arith.constant 5.000000e-01 : f32
    %51 = vector.broadcast %cst_31 : f32 to vector<64x128xf32>
    %52 = arith.mulf %51, %50 : vector<64x128xf32>
    %53 = math.tanh %52 : vector<64x128xf32>
    %cst_32 = arith.constant 5.000000e-01 : f32
    %54 = vector.broadcast %cst_32 : f32 to vector<64x128xf32>
    %55 = arith.mulf %54, %53 : vector<64x128xf32>
    %cst_33 = arith.constant 5.000000e-01 : f32
    %56 = vector.broadcast %cst_33 : f32 to vector<64x128xf32>
    %57 = arith.addf %55, %56 : vector<64x128xf32>
    %c0_34 = arith.constant 0 : index
    %c512 = arith.constant 512 : index
    %58 = vector.load %arg4[%c0_34, %c512] : memref<128x768xf32, #tpu.memory_space<vmem>>, vector<128x128xf32>
    %c0_35 = arith.constant 0 : index
    %c512_36 = arith.constant 512 : index
    %59 = vector.load %arg5[%c0_35, %c512_36] : memref<1x768xf32, #tpu.memory_space<vmem>>, vector<1x128xf32>
    %cst_37 = arith.constant dense<0.000000e+00> : vector<64x128xf32>
    %60 = tpu.matmul %12, %58, %cst_37 {dimension_numbers = #tpu.dot_dimension_numbers<[1], [0], [0], [1], [0, 0, 1, 1], [], []>} : vector<64x128xf32>, vector<128x128xf32>, vector<64x128xf32> -> vector<64x128xf32>
    %61 = vector.broadcast %59 : vector<1x128xf32> to vector<64x128xf32>
    %62 = arith.addf %60, %61 : vector<64x128xf32>
    %63 = math.tanh %62 : vector<64x128xf32>
    %c0_38 = arith.constant 0 : index
    %c640 = arith.constant 640 : index
    %64 = vector.load %arg4[%c0_38, %c640] : memref<128x768xf32, #tpu.memory_space<vmem>>, vector<128x128xf32>
    %c0_39 = arith.constant 0 : index
    %c640_40 = arith.constant 640 : index
    %65 = vector.load %arg5[%c0_39, %c640_40] : memref<1x768xf32, #tpu.memory_space<vmem>>, vector<1x128xf32>
    %cst_41 = arith.constant dense<0.000000e+00> : vector<64x128xf32>
    %66 = tpu.matmul %12, %64, %cst_41 {dimension_numbers = #tpu.dot_dimension_numbers<[1], [0], [0], [1], [0, 0, 1, 1], [], []>} : vector<64x128xf32>, vector<128x128xf32>, vector<64x128xf32> -> vector<64x128xf32>
    %67 = vector.broadcast %65 : vector<1x128xf32> to vector<64x128xf32>
    %68 = arith.addf %66, %67 : vector<64x128xf32>
    %cst_42 = arith.constant 5.000000e-01 : f32
    %69 = vector.broadcast %cst_42 : f32 to vector<64x128xf32>
    %70 = arith.mulf %69, %68 : vector<64x128xf32>
    %71 = math.tanh %70 : vector<64x128xf32>
    %cst_43 = arith.constant 5.000000e-01 : f32
    %72 = vector.broadcast %cst_43 : f32 to vector<64x128xf32>
    %73 = arith.mulf %72, %71 : vector<64x128xf32>
    %cst_44 = arith.constant 5.000000e-01 : f32
    %74 = vector.broadcast %cst_44 : f32 to vector<64x128xf32>
    %75 = arith.addf %73, %74 : vector<64x128xf32>
    %76 = arith.mulf %57, %63 : vector<64x128xf32>
    %77 = math.tanh %76 : vector<64x128xf32>
    %78 = arith.mulf %75, %77 : vector<64x128xf32>
    %c0_45 = arith.constant 0 : index
    %c0_46 = arith.constant 0 : index
    %79 = vector.load %arg6[%c0_45, %c0_46] : memref<128x128xf32, #tpu.memory_space<vmem>>, vector<128x128xf32>
    %cst_47 = arith.constant dense<0.000000e+00> : vector<64x128xf32>
    %80 = tpu.matmul %45, %79, %cst_47 {dimension_numbers = #tpu.dot_dimension_numbers<[1], [0], [0], [1], [0, 0, 1, 1], [], []>} : vector<64x128xf32>, vector<128x128xf32>, vector<64x128xf32> -> vector<64x128xf32>
    %c0_48 = arith.constant 0 : index
    %c0_49 = arith.constant 0 : index
    %81 = vector.load %arg7[%c0_48, %c0_49] : memref<128x128xf32, #tpu.memory_space<vmem>>, vector<128x128xf32>
    %cst_50 = arith.constant dense<0.000000e+00> : vector<64x128xf32>
    %82 = tpu.matmul %78, %81, %cst_50 {dimension_numbers = #tpu.dot_dimension_numbers<[1], [0], [0], [1], [0, 0, 1, 1], [], []>} : vector<64x128xf32>, vector<128x128xf32>, vector<64x128xf32> -> vector<64x128xf32>
    %83 = arith.addf %80, %82 : vector<64x128xf32>
    %c0_51 = arith.constant 0 : index
    %c0_52 = arith.constant 0 : index
    %84 = vector.load %arg8[%c0_51, %c0_52] : memref<1x128xf32, #tpu.memory_space<vmem>>, vector<1x128xf32>
    %85 = vector.broadcast %84 : vector<1x128xf32> to vector<64x128xf32>
    %86 = arith.addf %83, %85 : vector<64x128xf32>
    %cst_53 = arith.constant 5.000000e-01 : f32
    %87 = vector.broadcast %cst_53 : f32 to vector<64x128xf32>
    %88 = arith.mulf %87, %86 : vector<64x128xf32>
    %89 = math.tanh %88 : vector<64x128xf32>
    %cst_54 = arith.constant 5.000000e-01 : f32
    %90 = vector.broadcast %cst_54 : f32 to vector<64x128xf32>
    %91 = arith.mulf %90, %89 : vector<64x128xf32>
    %cst_55 = arith.constant 5.000000e-01 : f32
    %92 = vector.broadcast %cst_55 : f32 to vector<64x128xf32>
    %93 = arith.addf %91, %92 : vector<64x128xf32>
    %c0_56 = arith.constant 0 : index
    %c0_57 = arith.constant 0 : index
    %94 = vector.load %arg9[%c0_56, %c0_57] : memref<64x128xf32, #tpu.memory_space<vmem>>, vector<64x128xf32>
    tpu.vector_store %arg9[%c0_56, %c0_57], %93 {strides = array<i32>} : memref<64x128xf32, #tpu.memory_space<vmem>>, vector<64x128xf32>,
    return
  }
  func.func @transform_0(%arg0: i32) -> (i32, i32) {
    %c0_i32 = arith.constant 0 : i32
    %c0_i32_0 = arith.constant 0 : i32
    return %arg0, %c0_i32 : i32, i32
  }
  func.func @transform_1(%arg0: i32) -> (i32, i32) {
    %c0_i32 = arith.constant 0 : i32
    %c0_i32_0 = arith.constant 0 : i32
    %c0_i32_1 = arith.constant 0 : i32
    return %c0_i32, %c0_i32_0 : i32, i32
  }
  func.func @transform_2(%arg0: i32) -> (i32, i32) {
    %c0_i32 = arith.constant 0 : i32
    %c0_i32_0 = arith.constant 0 : i32
    %c0_i32_1 = arith.constant 0 : i32
    return %c0_i32, %c0_i32_0 : i32, i32
  }
  func.func @transform_3(%arg0: i32) -> (i32, i32) {
    %c0_i32 = arith.constant 0 : i32
    %c0_i32_0 = arith.constant 0 : i32
    %c0_i32_1 = arith.constant 0 : i32
    return %c0_i32, %c0_i32_0 : i32, i32
  }
  func.func @transform_4(%arg0: i32) -> (i32, i32) {
    %c0_i32 = arith.constant 0 : i32
    %c0_i32_0 = arith.constant 0 : i32
    %c0_i32_1 = arith.constant 0 : i32
    return %c0_i32, %c0_i32_0 : i32, i32
  }
  func.func @transform_5(%arg0: i32) -> (i32, i32) {
    %c0_i32 = arith.constant 0 : i32
    %c0_i32_0 = arith.constant 0 : i32
    %c0_i32_1 = arith.constant 0 : i32
    return %c0_i32, %c0_i32_0 : i32, i32
  }
  func.func @transform_6(%arg0: i32) -> (i32, i32) {
    %c0_i32 = arith.constant 0 : i32
    %c0_i32_0 = arith.constant 0 : i32
    %c0_i32_1 = arith.constant 0 : i32
    return %c0_i32, %c0_i32_0 : i32, i32
  }
  func.func @transform_7(%arg0: i32) -> (i32, i32) {
    %c0_i32 = arith.constant 0 : i32
    %c0_i32_0 = arith.constant 0 : i32
    %c0_i32_1 = arith.constant 0 : i32
    return %c0_i32, %c0_i32_0 : i32, i32
  }
  func.func @transform_8(%arg0: i32) -> (i32, i32) {
    %c0_i32 = arith.constant 0 : i32
    %c0_i32_0 = arith.constant 0 : i32
    return %arg0, %c0_i32 : i32, i32
  }
}

</mosaic_0001>

<llo_original>
// kernel: tpu_custom_call.1
$region0: #{tpu_custom_call.1}
  #allocation0 [shape = 'u32[]', space=smem, size = 0x4, offset = 0x4, fixed_abs, tag = 'smem constant byte address 0x4 - core index']
  #allocation1 [shape = 'u32[144,128]{1,0:T(1,128)}', space=vmem, size = 0x12000, scoped, tag = 'internal scratch']
  %s0 = inlined_call_operand.hbm [shape: f32[128,128], index: 0, kind: input, shape index: {}]
  %s1 = inlined_call_operand.hbm [shape: f32[128,128], index: 1, kind: input, shape index: {}]
  %s2 = inlined_call_operand.vmem [shape: f32[1,128], index: 2, kind: input, shape index: {}]
  %s3 = inlined_call_operand.hbm [shape: f32[128,768], index: 3, kind: input, shape index: {}]
  %s4 = inlined_call_operand.vmem [shape: f32[1,768], index: 4, kind: input, shape index: {}]
  %s5 = inlined_call_operand.hbm [shape: f32[128,128], index: 5, kind: input, shape index: {}]
  %s6 = inlined_call_operand.hbm [shape: f32[128,128], index: 6, kind: input, shape index: {}]
  %s7 = inlined_call_operand.vmem [shape: f32[1,128], index: 7, kind: input, shape index: {}]
  %s8 = inlined_call_operand.hbm [shape: f32[128,128], index: 8, kind: output, shape index: {}]
  %s9 = sld [smem:[#allocation0]]
  $region85: #{tpu_custom_call.1} parent=0
    _
  %s11 = ssub.s32 1, %s9
  %s12 = scalar_select 0, %s11, %s9
  $region1: #{tpu_custom_call.1} parent=0
    #allocation2 [shape = 'u8[65536]{0}', space=vmem, size = 0x10000, scoped, tag = 'input window, operand 0']
    #allocation3 [shape = 's32[2]{0}', space=sflag, size = 0x8, scoped, tag = 'scoped memory for tpu_custom_call.1']
    #allocation4 [shape = 's32[2]{0}', space=sflag, size = 0x8, scoped, tag = 'scoped memory for tpu_custom_call.1']
    #allocation5 [shape = 'u8[65536]{0}', space=vmem, size = 0x10000, scoped, tag = 'input window, operand 1, single buffered']
    #allocation6 [shape = 's32[1]{0}', space=sflag, size = 0x4, scoped, tag = 'scoped memory for tpu_custom_call.1']
    #allocation7 [shape = 'u8[393216]{0}', space=vmem, size = 0x60000, scoped, tag = 'input window, operand 3, single buffered']
    #allocation8 [shape = 'u8[65536]{0}', space=vmem, size = 0x10000, scoped, tag = 'input window, operand 5, single buffered']
    #allocation9 [shape = 's32[1]{0}', space=sflag, size = 0x4, scoped, tag = 'scoped memory for tpu_custom_call.1']
    #allocation10 [shape = 'u8[65536]{0}', space=vmem, size = 0x10000, scoped, tag = 'input window, operand 6, single buffered']
    #allocation11 [shape = 'u8[65536]{0}', space=vmem, size = 0x10000, scoped, tag = 'output window, operand 0']
    %13 = vsyncpa [#allocation3], 0
    %s14 = scalar_lea.sflag [#allocation3], 1
    %15 = vsyncpa %s14, 0
    %16 = vsyncpa [#allocation6], 0
    %17 = vsyncpa [#allocation9], 0
    %18 = vsyncpa [#allocation4], 0
    %s19 = scalar_lea.sflag [#allocation4], 1
    %20 = vsyncpa %s19, 0
    loop: start=0, step=1, limit=4
    $region2: #{tpu_custom_call.1} parent=1 // loop_pre_header
      _
    $region3: #{tpu_custom_call.1} parent=1 // loop_header
      %s22 = sphi 0, %s26
      %p23 = scmp.ge.s32.totalorder %s22, 4
      %s32 = sphi 0, %s34
      %s35 = sphi 0, %s32
      %s36 = sphi 0, %s35
      %s52 = sphi 0, %s36
      %s56 = sphi 0, %s56
      %s58 = sphi 0, %s56
      %s59 = sphi 0, %s58
      %s73 = sphi 0, %s59
      %s77 = sphi 0, %s77
      %s79 = sphi 0, %s77
      %s80 = sphi 0, %s79
      %s94 = sphi 0, %s80
      %s98 = sphi 0, %s98
      %s100 = sphi 0, %s98
      %s101 = sphi 0, %s100
      %s115 = sphi 0, %s101
      %s119 = sphi 0, %s119
      %s121 = sphi 0, %s119
      %s122 = sphi 0, %s121
      %s136 = sphi 0, %s122
      %s140 = sphi 0, %s140
      %s142 = sphi 0, %s140
      %s143 = sphi 0, %s142
      %s157 = sphi 0, %s143
      %s161 = sphi 0, %s161
      %s163 = sphi 0, %s161
      %s164 = sphi 0, %s163
      %s178 = sphi 0, %s164
      %s182 = sphi 0, %s182
      %s184 = sphi 0, %s182
      %s185 = sphi 0, %s184
      %s199 = sphi 0, %s185
      %s205 = sphi 0, %s207
      %s208 = sphi 0, %s205
      %s209 = sphi 0, %s208
      %s225 = sphi 0, %s209
    $region4: #{tpu_custom_call.1} parent=1 // loop_header_branch
      %25 = sbr.rel (%p23) target = $region8
    $region5: #{tpu_custom_call.1} parent=1 // loop_body
      %s27 = ssub.s32 %s22, 1
      %s28 = ssub.s32 %s22, 2
      %s29 = sadd.s32 %s22, 1
      %s30 = ssub.s32 %s22, %s29
      %p31 = scmp.eq.s32.totalorder %s30, 0
      %s33 = sadd.s32 %s32, 1
      %s34 = scalar_select %p31, %s32, %s33
      %p37 = pneg %p31
      %p38 = scmp.eq.s32.totalorder %s22, 1
      %p39 = por %p37, %p38
      %p40 = scmp.ne.s32.totalorder %s32, %s35
      %p41 = scmp.eq.s32.totalorder %s22, 0
      %p42 = por %p40, %p41
      %p43 = scmp.ne.s32.totalorder %s32, %s35
      %p44 = scmp.eq.s32.totalorder %s27, 1
      %p45 = por %p43, %p44
      %p46 = scmp.ne.s32.totalorder %s35, %s36
      %p47 = scmp.eq.s32.totalorder %s27, 0
      %p48 = por %p46, %p47
      %p49 = scmp.ne.s32.totalorder %s35, %s36
      %p50 = scmp.eq.s32.totalorder %s28, 1
      %p51 = por %p49, %p50
      %p53 = scmp.ne.s32.totalorder %s36, %s52
      %p54 = scmp.eq.s32.totalorder %s28, 0
      %p55 = por %p53, %p54
      %s57 = sadd.s32 %s56, 1
      %p60 = scmp.eq.s32.totalorder %s22, 1
      %p61 = scmp.ne.s32.totalorder %s56, %s58
      %p62 = scmp.eq.s32.totalorder %s22, 0
      %p63 = por %p61, %p62
      %p64 = scmp.ne.s32.totalorder %s56, %s58
      %p65 = scmp.eq.s32.totalorder %s27, 1
      %p66 = por %p64, %p65
      %p67 = scmp.ne.s32.totalorder %s58, %s59
      %p68 = scmp.eq.s32.totalorder %s27, 0
      %p69 = por %p67, %p68
      %p70 = scmp.ne.s32.totalorder %s58, %s59
      %p71 = scmp.eq.s32.totalorder %s28, 1
      %p72 = por %p70, %p71
      %p74 = scmp.ne.s32.totalorder %s59, %s73
      %p75 = scmp.eq.s32.totalorder %s28, 0
      %p76 = por %p74, %p75
      %s78 = sadd.s32 %s77, 1
      %p81 = scmp.eq.s32.totalorder %s22, 1
      %p82 = scmp.ne.s32.totalorder %s77, %s79
      %p83 = scmp.eq.s32.totalorder %s22, 0
      %p84 = por %p82, %p83
      %p85 = scmp.ne.s32.totalorder %s77, %s79
      %p86 = scmp.eq.s32.totalorder %s27, 1
      %p87 = por %p85, %p86
      %p88 = scmp.ne.s32.totalorder %s79, %s80
      %p89 = scmp.eq.s32.totalorder %s27, 0
      %p90 = por %p88, %p89
      %p91 = scmp.ne.s32.totalorder %s79, %s80
      %p92 = scmp.eq.s32.totalorder %s28, 1
      %p93 = por %p91, %p92
      %p95 = scmp.ne.s32.totalorder %s80, %s94
      %p96 = scmp.eq.s32.totalorder %s28, 0
      %p97 = por %p95, %p96
      %s99 = sadd.s32 %s98, 1
      %p102 = scmp.eq.s32.totalorder %s22, 1
      %p103 = scmp.ne.s32.totalorder %s98, %s100
      %p104 = scmp.eq.s32.totalorder %s22, 0
      %p105 = por %p103, %p104
      %p106 = scmp.ne.s32.totalorder %s98, %s100
      %p107 = scmp.eq.s32.totalorder %s27, 1
      %p108 = por %p106, %p107
      %p109 = scmp.ne.s32.totalorder %s100, %s101
      %p110 = scmp.eq.s32.totalorder %s27, 0
      %p111 = por %p109, %p110
      %p112 = scmp.ne.s32.totalorder %s100, %s101
      %p113 = scmp.eq.s32.totalorder %s28, 1
      %p114 = por %p112, %p113
      %p116 = scmp.ne.s32.totalorder %s101, %s115
      %p117 = scmp.eq.s32.totalorder %s28, 0
      %p118 = por %p116, %p117
      %s120 = sadd.s32 %s119, 1
      %p123 = scmp.eq.s32.totalorder %s22, 1
      %p124 = scmp.ne.s32.totalorder %s119, %s121
      %p125 = scmp.eq.s32.totalorder %s22, 0
      %p126 = por %p124, %p125
      %p127 = scmp.ne.s32.totalorder %s119, %s121
      %p128 = scmp.eq.s32.totalorder %s27, 1
      %p129 = por %p127, %p128
      %p130 = scmp.ne.s32.totalorder %s121, %s122
      %p131 = scmp.eq.s32.totalorder %s27, 0
      %p132 = por %p130, %p131
      %p133 = scmp.ne.s32.totalorder %s121, %s122
      %p134 = scmp.eq.s32.totalorder %s28, 1
      %p135 = por %p133, %p134
      %p137 = scmp.ne.s32.totalorder %s122, %s136
      %p138 = scmp.eq.s32.totalorder %s28, 0
      %p139 = por %p137, %p138
      %s141 = sadd.s32 %s140, 1
      %p144 = scmp.eq.s32.totalorder %s22, 1
      %p145 = scmp.ne.s32.totalorder %s140, %s142
      %p146 = scmp.eq.s32.totalorder %s22, 0
      %p147 = por %p145, %p146
      %p148 = scmp.ne.s32.totalorder %s140, %s142
      %p149 = scmp.eq.s32.totalorder %s27, 1
      %p150 = por %p148, %p149
      %p151 = scmp.ne.s32.totalorder %s142, %s143
      %p152 = scmp.eq.s32.totalorder %s27, 0
      %p153 = por %p151, %p152
      %p154 = scmp.ne.s32.totalorder %s142, %s143
      %p155 = scmp.eq.s32.totalorder %s28, 1
      %p156 = por %p154, %p155
      %p158 = scmp.ne.s32.totalorder %s143, %s157
      %p159 = scmp.eq.s32.totalorder %s28, 0
      %p160 = por %p158, %p159
      %s162 = sadd.s32 %s161, 1
      %p165 = scmp.eq.s32.totalorder %s22, 1
      %p166 = scmp.ne.s32.totalorder %s161, %s163
      %p167 = scmp.eq.s32.totalorder %s22, 0
      %p168 = por %p166, %p167
      %p169 = scmp.ne.s32.totalorder %s161, %s163
      %p170 = scmp.eq.s32.totalorder %s27, 1
      %p171 = por %p169, %p170
      %p172 = scmp.ne.s32.totalorder %s163, %s164
      %p173 = scmp.eq.s32.totalorder %s27, 0
      %p174 = por %p172, %p173
      %p175 = scmp.ne.s32.totalorder %s163, %s164
      %p176 = scmp.eq.s32.totalorder %s28, 1
      %p177 = por %p175, %p176
      %p179 = scmp.ne.s32.totalorder %s164, %s178
      %p180 = scmp.eq.s32.totalorder %s28, 0
      %p181 = por %p179, %p180
      %s183 = sadd.s32 %s182, 1
      %p186 = scmp.eq.s32.totalorder %s22, 1
      %p187 = scmp.ne.s32.totalorder %s182, %s184
      %p188 = scmp.eq.s32.totalorder %s22, 0
      %p189 = por %p187, %p188
      %p190 = scmp.ne.s32.totalorder %s182, %s184
      %p191 = scmp.eq.s32.totalorder %s27, 1
      %p192 = por %p190, %p191
      %p193 = scmp.ne.s32.totalorder %s184, %s185
      %p194 = scmp.eq.s32.totalorder %s27, 0
      %p195 = por %p193, %p194
      %p196 = scmp.ne.s32.totalorder %s184, %s185
      %p197 = scmp.eq.s32.totalorder %s28, 1
      %p198 = por %p196, %p197
      %p200 = scmp.ne.s32.totalorder %s185, %s199
      %p201 = scmp.eq.s32.totalorder %s28, 0
      %p202 = por %p200, %p201
      %s203 = ssub.s32 %s22, %s29
      %p204 = scmp.eq.s32.totalorder %s203, 0
      %s206 = sadd.s32 %s205, 1
      %s207 = scalar_select %p204, %s205, %s206
      %p210 = pneg %p204
      %p211 = scmp.eq.s32.totalorder %s22, 1
      %p212 = por %p210, %p211
      %p213 = scmp.ne.s32.totalorder %s205, %s208
      %p214 = scmp.eq.s32.totalorder %s22, 0
      %p215 = por %p213, %p214
      %p216 = scmp.ne.s32.totalorder %s205, %s208
      %p217 = scmp.eq.s32.totalorder %s27, 1
      %p218 = por %p216, %p217
      %p219 = scmp.ne.s32.totalorder %s208, %s209
      %p220 = scmp.eq.s32.totalorder %s27, 0
      %p221 = por %p219, %p220
      %p222 = scmp.ne.s32.totalorder %s208, %s209
      %p223 = scmp.eq.s32.totalorder %s28, 1
      %p224 = por %p222, %p223
      %p226 = scmp.ne.s32.totalorder %s209, %s225
      %p227 = scmp.eq.s32.totalorder %s28, 0
      %p228 = por %p226, %p227
      %p229 = scmp.le.s32.totalorder 1, %s22
      %p230 = scmp.lt.s32.totalorder %s22, 3
      %p231 = pnand %p229, %p230
      %p232 = pneg %p231
      // Predicated region
      $region9: #{tpu_custom_call.1} parent=5 // pred_check
        _
      $region10: #{tpu_custom_call.1} parent=5 // pred_check_branch
        %234 = sbr.rel (%p231) target = $region12
      $region11: #{tpu_custom_call.1} parent=5 // pred_region
        %s235 = ssub.s32 %s22, 1
        // Predicated region
        $region13: #{tpu_custom_call.1} parent=11 // pred_check
          %p236 = pneg %p69
        $region14: #{tpu_custom_call.1} parent=11 // pred_check_branch
          %238 = sbr.rel (%p236) target = $region16
        $region15: #{tpu_custom_call.1} parent=11 // pred_region
          %s240 = ssub.s32 2048, 2048
          %241 = vsyncadd [#allocation6], %s240
          %s242 = sshll.u32 [#allocation5], 4
          %s243 = int_to_ptr.vmem [resolvable:$true] %s242
          %248 = dma.hbm_to_vmem [thread:$0]  %s1, 2048, %s243, [#allocation6], 128, 128, 8
        $region16: #{tpu_custom_call.1} parent=11 // pred_fallthru
          _
        // Predicated region
        $region17: #{tpu_custom_call.1} parent=11 // pred_check
          %p249 = pneg %p90
        $region18: #{tpu_custom_call.1} parent=11 // pred_check_branch
          %251 = sbr.rel (%p249) target = $region20
        $region19: #{tpu_custom_call.1} parent=11 // pred_region
          _
        $region20: #{tpu_custom_call.1} parent=11 // pred_fallthru
          _
        // Predicated region
        $region21: #{tpu_custom_call.1} parent=11 // pred_check
          %p252 = pneg %p111
        $region22: #{tpu_custom_call.1} parent=11 // pred_check_branch
          %254 = sbr.rel (%p252) target = $region24
        $region23: #{tpu_custom_call.1} parent=11 // pred_region
          %s256 = ssub.s32 12288, 12288
          %257 = vsyncadd [#allocation6], %s256
          %s258 = sshll.u32 [#allocation7], 4
          %s259 = int_to_ptr.vmem [resolvable:$true] %s258
          %264 = dma.hbm_to_vmem [thread:$0]  %s3, 12288, %s259, [#allocation6], 768, 768, 48
        $region24: #{tpu_custom_call.1} parent=11 // pred_fallthru
          _
        // Predicated region
        $region25: #{tpu_custom_call.1} parent=11 // pred_check
          %p265 = pneg %p132
        $region26: #{tpu_custom_call.1} parent=11 // pred_check_branch
          %267 = sbr.rel (%p265) target = $region28
        $region27: #{tpu_custom_call.1} parent=11 // pred_region
          _
        $region28: #{tpu_custom_call.1} parent=11 // pred_fallthru
          _
        // Predicated region
        $region29: #{tpu_custom_call.1} parent=11 // pred_check
          %p268 = pneg %p153
        $region30: #{tpu_custom_call.1} parent=11 // pred_check_branch
          %270 = sbr.rel (%p268) target = $region32
        $region31: #{tpu_custom_call.1} parent=11 // pred_region
          %s272 = ssub.s32 2048, 2048
          %273 = vsyncadd [#allocation9], %s272
          %s274 = sshll.u32 [#allocation8], 4
          %s275 = int_to_ptr.vmem [resolvable:$true] %s274
          %280 = dma.hbm_to_vmem [thread:$0]  %s5, 2048, %s275, [#allocation9], 128, 128, 8
        $region32: #{tpu_custom_call.1} parent=11 // pred_fallthru
          _
        // Predicated region
        $region33: #{tpu_custom_call.1} parent=11 // pred_check
          %p281 = pneg %p174
        $region34: #{tpu_custom_call.1} parent=11 // pred_check_branch
          %283 = sbr.rel (%p281) target = $region36
        $region35: #{tpu_custom_call.1} parent=11 // pred_region
          %s285 = ssub.s32 2048, 2048
          %286 = vsyncadd [#allocation9], %s285
          %s287 = sshll.u32 [#allocation10], 4
          %s288 = int_to_ptr.vmem [resolvable:$true] %s287
          %293 = dma.hbm_to_vmem [thread:$0]  %s6, 2048, %s288, [#allocation9], 128, 128, 8
        $region36: #{tpu_custom_call.1} parent=11 // pred_fallthru
          _
        // Predicated region
        $region37: #{tpu_custom_call.1} parent=11 // pred_check
          %p294 = pneg %p195
        $region38: #{tpu_custom_call.1} parent=11 // pred_check_branch
          %296 = sbr.rel (%p294) target = $region40
        $region39: #{tpu_custom_call.1} parent=11 // pred_region
          _
        $region40: #{tpu_custom_call.1} parent=11 // pred_fallthru
          _
      $region12: #{tpu_custom_call.1} parent=5 // pred_fallthru
        _
      %p297 = scmp.lt.s32.totalorder %s22, 2
      // Predicated region
      $region41: #{tpu_custom_call.1} parent=5 // pred_check
        %p298 = pneg %p297
      $region42: #{tpu_custom_call.1} parent=5 // pred_check_branch
        %300 = sbr.rel (%p298) target = $region44
      $region43: #{tpu_custom_call.1} parent=5 // pred_region
        // Predicated region
        $region45: #{tpu_custom_call.1} parent=43 // pred_check
          %p301 = pneg %p42
        $region46: #{tpu_custom_call.1} parent=43 // pred_check_branch
          %303 = sbr.rel (%p301) target = $region48
        $region47: #{tpu_custom_call.1} parent=43 // pred_region
          %s304 = sand.u32 %s32, 1
          %s305 = scalar_lea.sflag [#allocation3], %s304
          %s306 = sand.u32 %s32, 1
          %s307 = smul.addr %s306, 64
          %s308 = scalar_lea.vmem [#allocation2], %s307
          %s309 = smul.u32 8, %s22
          %s311 = ssub.s32 1024, 1024
          %312 = vsyncadd %s305, %s311
          %s313 = smul.addr %s309, 128
          %s314 = scalar_lea.hbm %s0, %s313
          %s315 = sshll.u32 %s308, 4
          %s316 = int_to_ptr.vmem [resolvable:$true] %s315
          %321 = dma.hbm_to_vmem [thread:$0]  %s314, 1024, %s316, %s305, 128, 128, 8
        $region48: #{tpu_custom_call.1} parent=43 // pred_fallthru
          _
      $region44: #{tpu_custom_call.1} parent=5 // pred_fallthru
        _
      %p322 = scmp.le.s32.totalorder 1, %s22
      %p323 = scmp.lt.s32.totalorder %s22, 3
      %p324 = pnand %p322, %p323
      %p325 = pneg %p324
      // Predicated region
      $region49: #{tpu_custom_call.1} parent=5 // pred_check
        _
      $region50: #{tpu_custom_call.1} parent=5 // pred_check_branch
        %327 = sbr.rel (%p324) target = $region52
      $region51: #{tpu_custom_call.1} parent=5 // pred_region
        %s328 = ssub.s32 %s22, 1
        %s329 = sand.u32 %s35, 1
        %s330 = scalar_lea.sflag [#allocation3], %s329
        %s331 = sand.u32 %s35, 1
        %s332 = smul.addr %s331, 64
        %s333 = scalar_lea.vmem [#allocation2], %s332
        // Predicated region
        $region53: #{tpu_custom_call.1} parent=51 // pred_check
          %p334 = pneg %p48
        $region54: #{tpu_custom_call.1} parent=51 // pred_check_branch
          %336 = sbr.rel (%p334) target = $region56
        $region55: #{tpu_custom_call.1} parent=51 // pred_region
          %337 = dma.done %s330, 1024
        $region56: #{tpu_custom_call.1} parent=51 // pred_fallthru
          _
        // Predicated region
        $region57: #{tpu_custom_call.1} parent=51 // pred_check
          %p338 = pneg %p69
        $region58: #{tpu_custom_call.1} parent=51 // pred_check_branch
          %340 = sbr.rel (%p338) target = $region60
        $region59: #{tpu_custom_call.1} parent=51 // pred_region
          %341 = dma.done [#allocation6], 2048
        $region60: #{tpu_custom_call.1} parent=51 // pred_fallthru
          _
        // Predicated region
        $region61: #{tpu_custom_call.1} parent=51 // pred_check
          %p342 = pneg %p111
        $region62: #{tpu_custom_call.1} parent=51 // pred_check_branch
          %344 = sbr.rel (%p342) target = $region64
        $region63: #{tpu_custom_call.1} parent=51 // pred_region
          %345 = dma.done [#allocation6], 12288
        $region64: #{tpu_custom_call.1} parent=51 // pred_fallthru
          _
        // Predicated region
        $region65: #{tpu_custom_call.1} parent=51 // pred_check
          %p346 = pneg %p153
        $region66: #{tpu_custom_call.1} parent=51 // pred_check_branch
          %348 = sbr.rel (%p346) target = $region68
        $region67: #{tpu_custom_call.1} parent=51 // pred_region
          %349 = dma.done [#allocation9], 2048
        $region68: #{tpu_custom_call.1} parent=51 // pred_fallthru
          _
        // Predicated region
        $region69: #{tpu_custom_call.1} parent=51 // pred_check
          %p350 = pneg %p174
        $region70: #{tpu_custom_call.1} parent=51 // pred_check_branch
          %352 = sbr.rel (%p350) target = $region72
        $region71: #{tpu_custom_call.1} parent=51 // pred_region
          %353 = dma.done [#allocation9], 2048
        $region72: #{tpu_custom_call.1} parent=51 // pred_fallthru
          _
        %s354 = sand.u32 %s35, 1
        %s355 = scalar_lea.sflag [#allocation3], %s354
        %s356 = sand.u32 %s35, 1
        %s357 = smul.addr %s356, 64
        %s358 = scalar_lea.vmem [#allocation2], %s357
        %p359 = pneg %p48
        %p360 = pneg %p45
        %p361 = pneg %p69
        %p362 = pneg %p66
        %p363 = pneg %p90
        %p364 = pneg %p87
        %p365 = pneg %p111
        %p366 = pneg %p108
        %p367 = pneg %p132
        %p368 = pneg %p129
        %p369 = pneg %p153
        %p370 = pneg %p150
        %p371 = pneg %p174
        %p372 = pneg %p171
        %p373 = pneg %p195
        %p374 = pneg %p192
        %p375 = pneg %p221
        %p376 = pneg %p218
        %s377 = sand.u32 %s208, 1
        %s378 = scalar_lea.sflag [#allocation4], %s377
        %s379 = sand.u32 %s208, 1
        %s380 = smul.addr %s379, 64
        %s381 = scalar_lea.vmem [#allocation11], %s380
        %s382 = smul.u32 8, %s27
        %s383 = smul.u32 8, %s27
        %v384 = vld [vmem:[%s333] sm:$0xff]
        %v385 = vld [vmem:[%s333 + $0x8] sm:$0xff]
        %v386 = vld [vmem:[%s333 + $0x10] sm:$0xff]
        %v387 = vld [vmem:[%s333 + $0x18] sm:$0xff]
        %v388 = vld [vmem:[%s333 + $0x20] sm:$0xff]
        %v389 = vld [vmem:[%s333 + $0x28] sm:$0xff]
        %v390 = vld [vmem:[%s333 + $0x30] sm:$0xff]
        %v391 = vld [vmem:[%s333 + $0x38] sm:$0xff]
        %v392 = vld [vmem:[#allocation5] sm:$0xff]
        %v393 = vld [vmem:[#allocation5 + $0x8] sm:$0xff]
        %v394 = vld [vmem:[#allocation5 + $0x10] sm:$0xff]
        %v395 = vld [vmem:[#allocation5 + $0x18] sm:$0xff]
        %v396 = vld [vmem:[#allocation5 + $0x20] sm:$0xff]
        %v397 = vld [vmem:[#allocation5 + $0x28] sm:$0xff]
        %v398 = vld [vmem:[#allocation5 + $0x30] sm:$0xff]
        %v399 = vld [vmem:[#allocation5 + $0x38] sm:$0xff]
        %v400 = vld [vmem:[#allocation5 + $0x40] sm:$0xff]
        %v401 = vld [vmem:[#allocation5 + $0x48] sm:$0xff]
        %v402 = vld [vmem:[#allocation5 + $0x50] sm:$0xff]
        %v403 = vld [vmem:[#allocation5 + $0x58] sm:$0xff]
        %v404 = vld [vmem:[#allocation5 + $0x60] sm:$0xff]
        %v405 = vld [vmem:[#allocation5 + $0x68] sm:$0xff]
        %v406 = vld [vmem:[#allocation5 + $0x70] sm:$0xff]
        %v407 = vld [vmem:[#allocation5 + $0x78] sm:$0xff]
        %v408 = vld [vmem:[%s2] sm:$0x1]
        %v410 = vlaneseq
        %v411 = vshrl.u32 %v410, 7
        %v412 = vsub.s32 0, %v411
        %v413 = vrot.slane %v408, %v412
        %415 = vmatprep.subr.mxu0 0.0
        %416 = vmatpush1.msra.mxu0 %v407
        %417 = vmatprep.subr.mxu0 0.0
        %418 = vmatpush1.msra.mxu0 %v406
        %419 = vmatprep.subr.mxu0 0.0
        %420 = vmatpush1.msra.mxu0 %v405
        %421 = vmatprep.subr.mxu0 0.0
        %422 = vmatpush1.msra.mxu0 %v404
        %423 = vmatprep.subr.mxu0 0.0
        %424 = vmatpush1.msra.mxu0 %v403
        %425 = vmatprep.subr.mxu0 0.0
        %426 = vmatpush1.msra.mxu0 %v402
        %427 = vmatprep.subr.mxu0 0.0
        %428 = vmatpush1.msra.mxu0 %v401
        %429 = vmatprep.subr.mxu0 0.0
        %430 = vmatpush1.msra.mxu0 %v400
        %431 = vmatprep.subr.mxu0 0.0
        %432 = vmatpush1.msra.mxu0 %v399
        %433 = vmatprep.subr.mxu0 0.0
        %434 = vmatpush1.msra.mxu0 %v398
        %435 = vmatprep.subr.mxu0 0.0
        %436 = vmatpush1.msra.mxu0 %v397
        %437 = vmatprep.subr.mxu0 0.0
        %438 = vmatpush1.msra.mxu0 %v396
        %439 = vmatprep.subr.mxu0 0.0
        %440 = vmatpush1.msra.mxu0 %v395
        %441 = vmatprep.subr.mxu0 0.0
        %442 = vmatpush1.msra.mxu0 %v394
        %443 = vmatprep.subr.mxu0 0.0
        %444 = vmatpush1.msra.mxu0 %v393
        %445 = vmatprep.subr.mxu0 0.0
        %446 = vmatpush1.msra.mxu0 %v392
        %447 = vmatprep.subr.mxu0 0.0
        %448 = vmatpush2.msra.mxu0 0.0
        %449 = vmatprep.subr.mxu0 0.0
        %450 = vmatpush2.msra.mxu0 0.0
        %451 = vmatprep.subr.mxu0 0.0
        %452 = vmatpush2.msra.mxu0 0.0
        %453 = vmatprep.subr.mxu0 0.0
        %454 = vmatpush2.msra.mxu0 0.0
        %455 = vmatprep.subr.mxu0 0.0
        %456 = vmatpush2.msra.mxu0 0.0
        %457 = vmatprep.subr.mxu0 0.0
        %458 = vmatpush2.msra.mxu0 0.0
        %459 = vmatprep.subr.mxu0 0.0
        %460 = vmatpush2.msra.mxu0 0.0
        %461 = vmatprep.subr.mxu0 0.0
        %462 = vmatpush2.msra.mxu0 0.0
        %463 = vmatprep.subr.mxu0 0.0
        %464 = vmatpush2.msra.mxu0 0.0
        %465 = vmatprep.subr.mxu0 0.0
        %466 = vmatpush2.msra.mxu0 0.0
        %467 = vmatprep.subr.mxu0 0.0
        %468 = vmatpush2.msra.mxu0 0.0
        %469 = vmatprep.subr.mxu0 0.0
        %470 = vmatpush2.msra.mxu0 0.0
        %471 = vmatprep.subr.mxu0 0.0
        %472 = vmatpush2.msra.mxu0 0.0
        %473 = vmatprep.subr.mxu0 0.0
        %474 = vmatpush2.msra.mxu0 0.0
        %475 = vmatprep.subr.mxu0 0.0
        %476 = vmatpush2.msra.mxu0 0.0
        %477 = vmatprep.subr.mxu0 0.0
        %478 = vmatpush2.msra.mxu0 0.0
        %479 = vmatprep.mubr.f32.mxu0 0.0
        %480 = vmatmul.mubr.f32.gmra.mxu0 %v384
        %v481 = vpop.f32.mrf.mxu0
        %v482 = vadd.f32 %v413, %v481
        %v483 = vpop.f32.mrf.mxu0
        %484 = vmatprep.mubr.f32.mxu0 0.0
        %485 = vmatmul.mubr.f32.gmra.mxu0 %v385
        %v486 = vpop.f32.mrf.mxu0
        %v487 = vadd.f32 %v413, %v486
        %v488 = vpop.f32.mrf.mxu0
        %489 = vmatprep.mubr.f32.mxu0 0.0
        %490 = vmatmul.mubr.f32.gmra.mxu0 %v386
        %v491 = vpop.f32.mrf.mxu0
        %v492 = vadd.f32 %v413, %v491
        %v493 = vpop.f32.mrf.mxu0
        %494 = vmatprep.mubr.f32.mxu0 0.0
        %495 = vmatmul.mubr.f32.gmra.mxu0 %v387
        %v496 = vpop.f32.mrf.mxu0
        %v497 = vadd.f32 %v413, %v496
        %v498 = vpop.f32.mrf.mxu0
        %499 = vmatprep.mubr.f32.mxu0 0.0
        %500 = vmatmul.mubr.f32.gmra.mxu0 %v388
        %v501 = vpop.f32.mrf.mxu0
        %v502 = vadd.f32 %v413, %v501
        %v503 = vpop.f32.mrf.mxu0
        %504 = vmatprep.mubr.f32.mxu0 0.0
        %505 = vmatmul.mubr.f32.gmra.mxu0 %v389
        %v506 = vpop.f32.mrf.mxu0
        %v507 = vadd.f32 %v413, %v506
        %v508 = vpop.f32.mrf.mxu0
        %509 = vmatprep.mubr.f32.mxu0 0.0
        %510 = vmatmul.mubr.f32.gmra.mxu0 %v390
        %v511 = vpop.f32.mrf.mxu0
        %v512 = vadd.f32 %v413, %v511
        %v513 = vpop.f32.mrf.mxu0
        %514 = vmatprep.mubr.f32.mxu0 0.0
        %515 = vmatmul.mubr.f32.gmra.mxu0 %v391
        %v516 = vpop.f32.mrf.mxu0
        %v517 = vadd.f32 %v413, %v516
        %v518 = vpop.f32.mrf.mxu0
        %519 = vdwg.mxu0
        %v520 = vmul.f32 %v482, 0.5
        %v521 = vmul.f32 %v487, 0.5
        %v522 = vmul.f32 %v492, 0.5
        %v523 = vmul.f32 %v497, 0.5
        %v524 = vmul.f32 %v502, 0.5
        %v525 = vmul.f32 %v507, 0.5
        %v526 = vmul.f32 %v512, 0.5
        %v527 = vmul.f32 %v517, 0.5
        %v528 = vtanh.pop %v520
        %v529 = vtanh.pop %v521
        %v530 = vtanh.pop %v522
        %v531 = vtanh.pop %v523
        %v532 = vtanh.pop %v524
        %v533 = vtanh.pop %v525
        %v534 = vtanh.pop %v526
        %v535 = vtanh.pop %v527
        %v536 = vmul.f32 %v528, 0.5
        %v537 = vmul.f32 %v529, 0.5
        %v538 = vmul.f32 %v530, 0.5
        %v539 = vmul.f32 %v531, 0.5
        %v540 = vmul.f32 %v532, 0.5
        %v541 = vmul.f32 %v533, 0.5
        %v542 = vmul.f32 %v534, 0.5
        %v543 = vmul.f32 %v535, 0.5
        %v544 = vadd.f32 %v536, 0.5
        %v545 = vadd.f32 %v537, 0.5
        %v546 = vadd.f32 %v538, 0.5
        %v547 = vadd.f32 %v539, 0.5
        %v548 = vadd.f32 %v540, 0.5
        %v549 = vadd.f32 %v541, 0.5
        %v550 = vadd.f32 %v542, 0.5
        %v551 = vadd.f32 %v543, 0.5
        %v552 = vld [vmem:[#allocation7] sm:$0xff]
        %v553 = vld [vmem:[#allocation7 + $0x30] sm:$0xff]
        %v554 = vld [vmem:[#allocation7 + $0x60] sm:$0xff]
        %v555 = vld [vmem:[#allocation7 + $0x90] sm:$0xff]
        %v556 = vld [vmem:[#allocation7 + $0xc0] sm:$0xff]
        %v557 = vld [vmem:[#allocation7 + $0xf0] sm:$0xff]
        %v558 = vld [vmem:[#allocation7 + $0x120] sm:$0xff]
        %v559 = vld [vmem:[#allocation7 + $0x150] sm:$0xff]
        %v560 = vld [vmem:[#allocation7 + $0x180] sm:$0xff]
        %v561 = vld [vmem:[#allocation7 + $0x1b0] sm:$0xff]
        %v562 = vld [vmem:[#allocation7 + $0x1e0] sm:$0xff]
        %v563 = vld [vmem:[#allocation7 + $0x210] sm:$0xff]
        %v564 = vld [vmem:[#allocation7 + $0x240] sm:$0xff]
        %v565 = vld [vmem:[#allocation7 + $0x270] sm:$0xff]
        %v566 = vld [vmem:[#allocation7 + $0x2a0] sm:$0xff]
        %v567 = vld [vmem:[#allocation7 + $0x2d0] sm:$0xff]
        %v568 = vld [vmem:[%s4] sm:$0x1]
        %v570 = vlaneseq
        %v571 = vshrl.u32 %v570, 7
        %v572 = vsub.s32 0, %v571
        %v573 = vrot.slane %v568, %v572
        %575 = vmatprep.subr.mxu0 0.0
        %576 = vmatpush1.msra.mxu0 %v567
        %577 = vmatprep.subr.mxu0 0.0
        %578 = vmatpush1.msra.mxu0 %v566
        %579 = vmatprep.subr.mxu0 0.0
        %580 = vmatpush1.msra.mxu0 %v565
        %581 = vmatprep.subr.mxu0 0.0
        %582 = vmatpush1.msra.mxu0 %v564
        %583 = vmatprep.subr.mxu0 0.0
        %584 = vmatpush1.msra.mxu0 %v563
        %585 = vmatprep.subr.mxu0 0.0
        %586 = vmatpush1.msra.mxu0 %v562
        %587 = vmatprep.subr.mxu0 0.0
        %588 = vmatpush1.msra.mxu0 %v561
        %589 = vmatprep.subr.mxu0 0.0
        %590 = vmatpush1.msra.mxu0 %v560
        %591 = vmatprep.subr.mxu0 0.0
        %592 = vmatpush1.msra.mxu0 %v559
        %593 = vmatprep.subr.mxu0 0.0
        %594 = vmatpush1.msra.mxu0 %v558
        %595 = vmatprep.subr.mxu0 0.0
        %596 = vmatpush1.msra.mxu0 %v557
        %597 = vmatprep.subr.mxu0 0.0
        %598 = vmatpush1.msra.mxu0 %v556
        %599 = vmatprep.subr.mxu0 0.0
        %600 = vmatpush1.msra.mxu0 %v555
        %601 = vmatprep.subr.mxu0 0.0
        %602 = vmatpush1.msra.mxu0 %v554
        %603 = vmatprep.subr.mxu0 0.0
        %604 = vmatpush1.msra.mxu0 %v553
        %605 = vmatprep.subr.mxu0 0.0
        %606 = vmatpush1.msra.mxu0 %v552
        %607 = vmatprep.subr.mxu0 0.0
        %608 = vmatpush2.msra.mxu0 0.0
        %609 = vmatprep.subr.mxu0 0.0
        %610 = vmatpush2.msra.mxu0 0.0
        %611 = vmatprep.subr.mxu0 0.0
        %612 = vmatpush2.msra.mxu0 0.0
        %613 = vmatprep.subr.mxu0 0.0
        %614 = vmatpush2.msra.mxu0 0.0
        %615 = vmatprep.subr.mxu0 0.0
        %616 = vmatpush2.msra.mxu0 0.0
        %617 = vmatprep.subr.mxu0 0.0
        %618 = vmatpush2.msra.mxu0 0.0
        %619 = vmatprep.subr.mxu0 0.0
        %620 = vmatpush2.msra.mxu0 0.0
        %621 = vmatprep.subr.mxu0 0.0
        %622 = vmatpush2.msra.mxu0 0.0
        %623 = vmatprep.subr.mxu0 0.0
        %624 = vmatpush2.msra.mxu0 0.0
        %625 = vmatprep.subr.mxu0 0.0
        %626 = vmatpush2.msra.mxu0 0.0
        %627 = vmatprep.subr.mxu0 0.0
        %628 = vmatpush2.msra.mxu0 0.0
        %629 = vmatprep.subr.mxu0 0.0
        %630 = vmatpush2.msra.mxu0 0.0
        %631 = vmatprep.subr.mxu0 0.0
        %632 = vmatpush2.msra.mxu0 0.0
        %633 = vmatprep.subr.mxu0 0.0
        %634 = vmatpush2.msra.mxu0 0.0
        %635 = vmatprep.subr.mxu0 0.0
        %636 = vmatpush2.msra.mxu0 0.0
        %637 = vmatprep.subr.mxu0 0.0
        %638 = vmatpush2.msra.mxu0 0.0
        %639 = vmatprep.mubr.f32.mxu0 0.0
        %640 = vmatmul.mubr.f32.gmra.mxu0 %v544
        %v641 = vpop.f32.mrf.mxu0
        %v642 = vadd.f32 %v573, %v641
        %v643 = vpop.f32.mrf.mxu0
        %644 = vmatprep.mubr.f32.mxu0 0.0
        %645 = vmatmul.mubr.f32.gmra.mxu0 %v545
        %v646 = vpop.f32.mrf.mxu0
        %v647 = vadd.f32 %v573, %v646
        %v648 = vpop.f32.mrf.mxu0
        %649 = vmatprep.mubr.f32.mxu0 0.0
        %650 = vmatmul.mubr.f32.gmra.mxu0 %v546
        %v651 = vpop.f32.mrf.mxu0
        %v652 = vadd.f32 %v573, %v651
        %v653 = vpop.f32.mrf.mxu0
        %654 = vmatprep.mubr.f32.mxu0 0.0
        %655 = vmatmul.mubr.f32.gmra.mxu0 %v547
        %v656 = vpop.f32.mrf.mxu0
        %v657 = vadd.f32 %v573, %v656
        %v658 = vpop.f32.mrf.mxu0
        %659 = vmatprep.mubr.f32.mxu0 0.0
        %660 = vmatmul.mubr.f32.gmra.mxu0 %v548
        %v661 = vpop.f32.mrf.mxu0
        %v662 = vadd.f32 %v573, %v661
        %v663 = vpop.f32.mrf.mxu0
        %664 = vmatprep.mubr.f32.mxu0 0.0
        %665 = vmatmul.mubr.f32.gmra.mxu0 %v549
        %v666 = vpop.f32.mrf.mxu0
        %v667 = vadd.f32 %v573, %v666
        %v668 = vpop.f32.mrf.mxu0
        %669 = vmatprep.mubr.f32.mxu0 0.0
        %670 = vmatmul.mubr.f32.gmra.mxu0 %v550
        %v671 = vpop.f32.mrf.mxu0
        %v672 = vadd.f32 %v573, %v671
        %v673 = vpop.f32.mrf.mxu0
        %674 = vmatprep.mubr.f32.mxu0 0.0
        %675 = vmatmul.mubr.f32.gmra.mxu0 %v551
        %v676 = vpop.f32.mrf.mxu0
        %v677 = vadd.f32 %v573, %v676
        %v678 = vpop.f32.mrf.mxu0
        %679 = vdwg.mxu0
        %v680 = vmul.f32 %v642, 0.5
        %v681 = vmul.f32 %v647, 0.5
        %v682 = vmul.f32 %v652, 0.5
        %v683 = vmul.f32 %v657, 0.5
        %v684 = vmul.f32 %v662, 0.5
        %v685 = vmul.f32 %v667, 0.5
        %v686 = vmul.f32 %v672, 0.5
        %v687 = vmul.f32 %v677, 0.5
        %v688 = vtanh.pop %v680
        %v689 = vtanh.pop %v681
        %v690 = vtanh.pop %v682
        %v691 = vtanh.pop %v683
        %v692 = vtanh.pop %v684
        %v693 = vtanh.pop %v685
        %v694 = vtanh.pop %v686
        %v695 = vtanh.pop %v687
        %v696 = vmul.f32 %v688, 0.5
        %v697 = vmul.f32 %v689, 0.5
        %v698 = vmul.f32 %v690, 0.5
        %v699 = vmul.f32 %v691, 0.5
        %v700 = vmul.f32 %v692, 0.5
        %v701 = vmul.f32 %v693, 0.5
        %v702 = vmul.f32 %v694, 0.5
        %v703 = vmul.f32 %v695, 0.5
        %v704 = vadd.f32 %v696, 0.5
        %v705 = vadd.f32 %v697, 0.5
        %v706 = vadd.f32 %v698, 0.5
        %v707 = vadd.f32 %v699, 0.5
        %v708 = vadd.f32 %v700, 0.5
        %v709 = vadd.f32 %v701, 0.5
        %v710 = vadd.f32 %v702, 0.5
        %v711 = vadd.f32 %v703, 0.5
        %v712 = vld [vmem:[#allocation7 + $0x8] sm:$0xff]
        %v713 = vld [vmem:[#allocation7 + $0x38] sm:$0xff]
        %v714 = vld [vmem:[#allocation7 + $0x68] sm:$0xff]
        %v715 = vld [vmem:[#allocation7 + $0x98] sm:$0xff]
        %v716 = vld [vmem:[#allocation7 + $0xc8] sm:$0xff]
        %v717 = vld [vmem:[#allocation7 + $0xf8] sm:$0xff]
        %v718 = vld [vmem:[#allocation7 + $0x128] sm:$0xff]
        %v719 = vld [vmem:[#allocation7 + $0x158] sm:$0xff]
        %v720 = vld [vmem:[#allocation7 + $0x188] sm:$0xff]
        %v721 = vld [vmem:[#allocation7 + $0x1b8] sm:$0xff]
        %v722 = vld [vmem:[#allocation7 + $0x1e8] sm:$0xff]
        %v723 = vld [vmem:[#allocation7 + $0x218] sm:$0xff]
        %v724 = vld [vmem:[#allocation7 + $0x248] sm:$0xff]
        %v725 = vld [vmem:[#allocation7 + $0x278] sm:$0xff]
        %v726 = vld [vmem:[#allocation7 + $0x2a8] sm:$0xff]
        %v727 = vld [vmem:[#allocation7 + $0x2d8] sm:$0xff]
        %v728 = vld [vmem:[%s4 + $0x1] sm:$0x1]
        %v730 = vlaneseq
        %v731 = vshrl.u32 %v730, 7
        %v732 = vsub.s32 0, %v731
        %v733 = vrot.slane %v728, %v732
        %735 = vmatprep.subr.mxu0 0.0
        %736 = vmatpush1.msra.mxu0 %v727
        %737 = vmatprep.subr.mxu0 0.0
        %738 = vmatpush1.msra.mxu0 %v726
        %739 = vmatprep.subr.mxu0 0.0
        %740 = vmatpush1.msra.mxu0 %v725
        %741 = vmatprep.subr.mxu0 0.0
        %742 = vmatpush1.msra.mxu0 %v724
        %743 = vmatprep.subr.mxu0 0.0
        %744 = vmatpush1.msra.mxu0 %v723
        %745 = vmatprep.subr.mxu0 0.0
        %746 = vmatpush1.msra.mxu0 %v722
        %747 = vmatprep.subr.mxu0 0.0
        %748 = vmatpush1.msra.mxu0 %v721
        %749 = vmatprep.subr.mxu0 0.0
        %750 = vmatpush1.msra.mxu0 %v720
        %751 = vmatprep.subr.mxu0 0.0
        %752 = vmatpush1.msra.mxu0 %v719
        %753 = vmatprep.subr.mxu0 0.0
        %754 = vmatpush1.msra.mxu0 %v718
        %755 = vmatprep.subr.mxu0 0.0
        %756 = vmatpush1.msra.mxu0 %v717
        %757 = vmatprep.subr.mxu0 0.0
        %758 = vmatpush1.msra.mxu0 %v716
        %759 = vmatprep.subr.mxu0 0.0
        %760 = vmatpush1.msra.mxu0 %v715
        %761 = vmatprep.subr.mxu0 0.0
        %762 = vmatpush1.msra.mxu0 %v714
        %763 = vmatprep.subr.mxu0 0.0
        %764 = vmatpush1.msra.mxu0 %v713
        %765 = vmatprep.subr.mxu0 0.0
        %766 = vmatpush1.msra.mxu0 %v712
        %767 = vmatprep.subr.mxu0 0.0
        %768 = vmatpush2.msra.mxu0 0.0
        %769 = vmatprep.subr.mxu0 0.0
        %770 = vmatpush2.msra.mxu0 0.0
        %771 = vmatprep.subr.mxu0 0.0
        %772 = vmatpush2.msra.mxu0 0.0
        %773 = vmatprep.subr.mxu0 0.0
        %774 = vmatpush2.msra.mxu0 0.0
        %775 = vmatprep.subr.mxu0 0.0
        %776 = vmatpush2.msra.mxu0 0.0
        %777 = vmatprep.subr.mxu0 0.0
        %778 = vmatpush2.msra.mxu0 0.0
        %779 = vmatprep.subr.mxu0 0.0
        %780 = vmatpush2.msra.mxu0 0.0
        %781 = vmatprep.subr.mxu0 0.0
        %782 = vmatpush2.msra.mxu0 0.0
        %783 = vmatprep.subr.mxu0 0.0
        %784 = vmatpush2.msra.mxu0 0.0
        %785 = vmatprep.subr.mxu0 0.0
        %786 = vmatpush2.msra.mxu0 0.0
        %787 = vmatprep.subr.mxu0 0.0
        %788 = vmatpush2.msra.mxu0 0.0
        %789 = vmatprep.subr.mxu0 0.0
        %790 = vmatpush2.msra.mxu0 0.0
        %791 = vmatprep.subr.mxu0 0.0
        %792 = vmatpush2.msra.mxu0 0.0
        %793 = vmatprep.subr.mxu0 0.0
        %794 = vmatpush2.msra.mxu0 0.0
        %795 = vmatprep.subr.mxu0 0.0
        %796 = vmatpush2.msra.mxu0 0.0
        %797 = vmatprep.subr.mxu0 0.0
        %798 = vmatpush2.msra.mxu0 0.0
        %799 = vmatprep.mubr.f32.mxu0 0.0
        %800 = vmatmul.mubr.f32.gmra.mxu0 %v544
        %v801 = vpop.f32.mrf.mxu0
        %v802 = vadd.f32 %v733, %v801
        %v803 = vpop.f32.mrf.mxu0
        %804 = vmatprep.mubr.f32.mxu0 0.0
        %805 = vmatmul.mubr.f32.gmra.mxu0 %v545
        %v806 = vpop.f32.mrf.mxu0
        %v807 = vadd.f32 %v733, %v806
        %v808 = vpop.f32.mrf.mxu0
        %809 = vmatprep.mubr.f32.mxu0 0.0
        %810 = vmatmul.mubr.f32.gmra.mxu0 %v546
        %v811 = vpop.f32.mrf.mxu0
        %v812 = vadd.f32 %v733, %v811
        %v813 = vpop.f32.mrf.mxu0
        %814 = vmatprep.mubr.f32.mxu0 0.0
        %815 = vmatmul.mubr.f32.gmra.mxu0 %v547
        %v816 = vpop.f32.mrf.mxu0
        %v817 = vadd.f32 %v733, %v816
        %v818 = vpop.f32.mrf.mxu0
        %819 = vmatprep.mubr.f32.mxu0 0.0
        %820 = vmatmul.mubr.f32.gmra.mxu0 %v548
        %v821 = vpop.f32.mrf.mxu0
        %v822 = vadd.f32 %v733, %v821
        %v823 = vpop.f32.mrf.mxu0
        %824 = vmatprep.mubr.f32.mxu0 0.0
        %825 = vmatmul.mubr.f32.gmra.mxu0 %v549
        %v826 = vpop.f32.mrf.mxu0
        %v827 = vadd.f32 %v733, %v826
        %v828 = vpop.f32.mrf.mxu0
        %829 = vmatprep.mubr.f32.mxu0 0.0
        %830 = vmatmul.mubr.f32.gmra.mxu0 %v550
        %v831 = vpop.f32.mrf.mxu0
        %v832 = vadd.f32 %v733, %v831
        %v833 = vpop.f32.mrf.mxu0
        %834 = vmatprep.mubr.f32.mxu0 0.0
        %835 = vmatmul.mubr.f32.gmra.mxu0 %v551
        %v836 = vpop.f32.mrf.mxu0
        %v837 = vadd.f32 %v733, %v836
        %v838 = vpop.f32.mrf.mxu0
        %839 = vdwg.mxu0
        %v840 = vtanh.pop %v802
        %v841 = vtanh.pop %v807
        %v842 = vtanh.pop %v812
        %v843 = vtanh.pop %v817
        %v844 = vtanh.pop %v822
        %v845 = vtanh.pop %v827
        %v846 = vtanh.pop %v832
        %v847 = vtanh.pop %v837
        %v848 = vld [vmem:[#allocation7 + $0x10] sm:$0xff]
        %v849 = vld [vmem:[#allocation7 + $0x40] sm:$0xff]
        %v850 = vld [vmem:[#allocation7 + $0x70] sm:$0xff]
        %v851 = vld [vmem:[#allocation7 + $0xa0] sm:$0xff]
        %v852 = vld [vmem:[#allocation7 + $0xd0] sm:$0xff]
        %v853 = vld [vmem:[#allocation7 + $0x100] sm:$0xff]
        %v854 = vld [vmem:[#allocation7 + $0x130] sm:$0xff]
        %v855 = vld [vmem:[#allocation7 + $0x160] sm:$0xff]
        %v856 = vld [vmem:[#allocation7 + $0x190] sm:$0xff]
        %v857 = vld [vmem:[#allocation7 + $0x1c0] sm:$0xff]
        %v858 = vld [vmem:[#allocation7 + $0x1f0] sm:$0xff]
        %v859 = vld [vmem:[#allocation7 + $0x220] sm:$0xff]
        %v860 = vld [vmem:[#allocation7 + $0x250] sm:$0xff]
        %v861 = vld [vmem:[#allocation7 + $0x280] sm:$0xff]
        %v862 = vld [vmem:[#allocation7 + $0x2b0] sm:$0xff]
        %v863 = vld [vmem:[#allocation7 + $0x2e0] sm:$0xff]
        %v864 = vld [vmem:[%s4 + $0x2] sm:$0x1]
        %v866 = vlaneseq
        %v867 = vshrl.u32 %v866, 7
        %v868 = vsub.s32 0, %v867
        %v869 = vrot.slane %v864, %v868
        %871 = vmatprep.subr.mxu0 0.0
        %872 = vmatpush1.msra.mxu0 %v863
        %873 = vmatprep.subr.mxu0 0.0
        %874 = vmatpush1.msra.mxu0 %v862
        %875 = vmatprep.subr.mxu0 0.0
        %876 = vmatpush1.msra.mxu0 %v861
        %877 = vmatprep.subr.mxu0 0.0
        %878 = vmatpush1.msra.mxu0 %v860
        %879 = vmatprep.subr.mxu0 0.0
        %880 = vmatpush1.msra.mxu0 %v859
        %881 = vmatprep.subr.mxu0 0.0
        %882 = vmatpush1.msra.mxu0 %v858
        %883 = vmatprep.subr.mxu0 0.0
        %884 = vmatpush1.msra.mxu0 %v857
        %885 = vmatprep.subr.mxu0 0.0
        %886 = vmatpush1.msra.mxu0 %v856
        %887 = vmatprep.subr.mxu0 0.0
        %888 = vmatpush1.msra.mxu0 %v855
        %889 = vmatprep.subr.mxu0 0.0
        %890 = vmatpush1.msra.mxu0 %v854
        %891 = vmatprep.subr.mxu0 0.0
        %892 = vmatpush1.msra.mxu0 %v853
        %893 = vmatprep.subr.mxu0 0.0
        %894 = vmatpush1.msra.mxu0 %v852
        %895 = vmatprep.subr.mxu0 0.0
        %896 = vmatpush1.msra.mxu0 %v851
        %897 = vmatprep.subr.mxu0 0.0
        %898 = vmatpush1.msra.mxu0 %v850
        %899 = vmatprep.subr.mxu0 0.0
        %900 = vmatpush1.msra.mxu0 %v849
        %901 = vmatprep.subr.mxu0 0.0
        %902 = vmatpush1.msra.mxu0 %v848
        %903 = vmatprep.subr.mxu0 0.0
        %904 = vmatpush2.msra.mxu0 0.0
        %905 = vmatprep.subr.mxu0 0.0
        %906 = vmatpush2.msra.mxu0 0.0
        %907 = vmatprep.subr.mxu0 0.0
        %908 = vmatpush2.msra.mxu0 0.0
        %909 = vmatprep.subr.mxu0 0.0
        %910 = vmatpush2.msra.mxu0 0.0
        %911 = vmatprep.subr.mxu0 0.0
        %912 = vmatpush2.msra.mxu0 0.0
        %913 = vmatprep.subr.mxu0 0.0
        %914 = vmatpush2.msra.mxu0 0.0
        %915 = vmatprep.subr.mxu0 0.0
        %916 = vmatpush2.msra.mxu0 0.0
        %917 = vmatprep.subr.mxu0 0.0
        %918 = vmatpush2.msra.mxu0 0.0
        %919 = vmatprep.subr.mxu0 0.0
        %920 = vmatpush2.msra.mxu0 0.0
        %921 = vmatprep.subr.mxu0 0.0
        %922 = vmatpush2.msra.mxu0 0.0
        %923 = vmatprep.subr.mxu0 0.0
        %924 = vmatpush2.msra.mxu0 0.0
        %925 = vmatprep.subr.mxu0 0.0
        %926 = vmatpush2.msra.mxu0 0.0
        %927 = vmatprep.subr.mxu0 0.0
        %928 = vmatpush2.msra.mxu0 0.0
        %929 = vmatprep.subr.mxu0 0.0
        %930 = vmatpush2.msra.mxu0 0.0
        %931 = vmatprep.subr.mxu0 0.0
        %932 = vmatpush2.msra.mxu0 0.0
        %933 = vmatprep.subr.mxu0 0.0
        %934 = vmatpush2.msra.mxu0 0.0
        %935 = vmatprep.mubr.f32.mxu0 0.0
        %936 = vmatmul.mubr.f32.gmra.mxu0 %v544
        %v937 = vpop.f32.mrf.mxu0
        %v938 = vadd.f32 %v869, %v937
        %v939 = vpop.f32.mrf.mxu0
        %940 = vmatprep.mubr.f32.mxu0 0.0
        %941 = vmatmul.mubr.f32.gmra.mxu0 %v545
        %v942 = vpop.f32.mrf.mxu0
        %v943 = vadd.f32 %v869, %v942
        %v944 = vpop.f32.mrf.mxu0
        %945 = vmatprep.mubr.f32.mxu0 0.0
        %946 = vmatmul.mubr.f32.gmra.mxu0 %v546
        %v947 = vpop.f32.mrf.mxu0
        %v948 = vadd.f32 %v869, %v947
        %v949 = vpop.f32.mrf.mxu0
        %950 = vmatprep.mubr.f32.mxu0 0.0
        %951 = vmatmul.mubr.f32.gmra.mxu0 %v547
        %v952 = vpop.f32.mrf.mxu0
        %v953 = vadd.f32 %v869, %v952
        %v954 = vpop.f32.mrf.mxu0
        %955 = vmatprep.mubr.f32.mxu0 0.0
        %956 = vmatmul.mubr.f32.gmra.mxu0 %v548
        %v957 = vpop.f32.mrf.mxu0
        %v958 = vadd.f32 %v869, %v957
        %v959 = vpop.f32.mrf.mxu0
        %960 = vmatprep.mubr.f32.mxu0 0.0
        %961 = vmatmul.mubr.f32.gmra.mxu0 %v549
        %v962 = vpop.f32.mrf.mxu0
        %v963 = vadd.f32 %v869, %v962
        %v964 = vpop.f32.mrf.mxu0
        %965 = vmatprep.mubr.f32.mxu0 0.0
        %966 = vmatmul.mubr.f32.gmra.mxu0 %v550
        %v967 = vpop.f32.mrf.mxu0
        %v968 = vadd.f32 %v869, %v967
        %v969 = vpop.f32.mrf.mxu0
        %970 = vmatprep.mubr.f32.mxu0 0.0
        %971 = vmatmul.mubr.f32.gmra.mxu0 %v551
        %v972 = vpop.f32.mrf.mxu0
        %v973 = vadd.f32 %v869, %v972
        %v974 = vpop.f32.mrf.mxu0
        %975 = vdwg.mxu0
        %v976 = vmul.f32 %v938, 0.5
        %v977 = vmul.f32 %v943, 0.5
        %v978 = vmul.f32 %v948, 0.5
        %v979 = vmul.f32 %v953, 0.5
        %v980 = vmul.f32 %v958, 0.5
        %v981 = vmul.f32 %v963, 0.5
        %v982 = vmul.f32 %v968, 0.5
        %v983 = vmul.f32 %v973, 0.5
        %v984 = vtanh.pop %v976
        %v985 = vtanh.pop %v977
        %v986 = vtanh.pop %v978
        %v987 = vtanh.pop %v979
        %v988 = vtanh.pop %v980
        %v989 = vtanh.pop %v981
        %v990 = vtanh.pop %v982
        %v991 = vtanh.pop %v983
        %v992 = vmul.f32 %v984, 0.5
        %v993 = vmul.f32 %v985, 0.5
        %v994 = vmul.f32 %v986, 0.5
        %v995 = vmul.f32 %v987, 0.5
        %v996 = vmul.f32 %v988, 0.5
        %v997 = vmul.f32 %v989, 0.5
        %v998 = vmul.f32 %v990, 0.5
        %v999 = vmul.f32 %v991, 0.5
        %v1000 = vadd.f32 %v992, 0.5
        %v1001 = vadd.f32 %v993, 0.5
        %v1002 = vadd.f32 %v994, 0.5
        %v1003 = vadd.f32 %v995, 0.5
        %v1004 = vadd.f32 %v996, 0.5
        %v1005 = vadd.f32 %v997, 0.5
        %v1006 = vadd.f32 %v998, 0.5
        %v1007 = vadd.f32 %v999, 0.5
        %v1008 = vmul.f32 %v704, %v840
        %v1009 = vmul.f32 %v705, %v841
        %v1010 = vmul.f32 %v706, %v842
        %v1011 = vmul.f32 %v707, %v843
        %v1012 = vmul.f32 %v708, %v844
        %v1013 = vmul.f32 %v709, %v845
        %v1014 = vmul.f32 %v710, %v846
        %v1015 = vmul.f32 %v711, %v847
        %v1016 = vtanh.pop %v1008
        %v1017 = vtanh.pop %v1009
        %v1018 = vtanh.pop %v1010
        %v1019 = vtanh.pop %v1011
        %v1020 = vtanh.pop %v1012
        %v1021 = vtanh.pop %v1013
        %v1022 = vtanh.pop %v1014
        %v1023 = vtanh.pop %v1015
        %v1024 = vmul.f32 %v1000, %v1016
        %v1025 = vmul.f32 %v1001, %v1017
        %v1026 = vmul.f32 %v1002, %v1018
        %v1027 = vmul.f32 %v1003, %v1019
        %v1028 = vmul.f32 %v1004, %v1020
        %v1029 = vmul.f32 %v1005, %v1021
        %v1030 = vmul.f32 %v1006, %v1022
        %v1031 = vmul.f32 %v1007, %v1023
        %v1032 = vld [vmem:[#allocation7 + $0x18] sm:$0xff]
        %v1033 = vld [vmem:[#allocation7 + $0x48] sm:$0xff]
        %v1034 = vld [vmem:[#allocation7 + $0x78] sm:$0xff]
        %v1035 = vld [vmem:[#allocation7 + $0xa8] sm:$0xff]
        %v1036 = vld [vmem:[#allocation7 + $0xd8] sm:$0xff]
        %v1037 = vld [vmem:[#allocation7 + $0x108] sm:$0xff]
        %v1038 = vld [vmem:[#allocation7 + $0x138] sm:$0xff]
        %v1039 = vld [vmem:[#allocation7 + $0x168] sm:$0xff]
        %v1040 = vld [vmem:[#allocation7 + $0x198] sm:$0xff]
        %v1041 = vld [vmem:[#allocation7 + $0x1c8] sm:$0xff]
        %v1042 = vld [vmem:[#allocation7 + $0x1f8] sm:$0xff]
        %v1043 = vld [vmem:[#allocation7 + $0x228] sm:$0xff]
        %v1044 = vld [vmem:[#allocation7 + $0x258] sm:$0xff]
        %v1045 = vld [vmem:[#allocation7 + $0x288] sm:$0xff]
        %v1046 = vld [vmem:[#allocation7 + $0x2b8] sm:$0xff]
        %v1047 = vld [vmem:[#allocation7 + $0x2e8] sm:$0xff]
        %v1048 = vld [vmem:[%s4 + $0x3] sm:$0x1]
        %v1050 = vlaneseq
        %v1051 = vshrl.u32 %v1050, 7
        %v1052 = vsub.s32 0, %v1051
        %v1053 = vrot.slane %v1048, %v1052
        %1055 = vmatprep.subr.mxu0 0.0
        %1056 = vmatpush1.msra.mxu0 %v1047
        %1057 = vmatprep.subr.mxu0 0.0
        %1058 = vmatpush1.msra.mxu0 %v1046
        %1059 = vmatprep.subr.mxu0 0.0
        %1060 = vmatpush1.msra.mxu0 %v1045
        %1061 = vmatprep.subr.mxu0 0.0
        %1062 = vmatpush1.msra.mxu0 %v1044
        %1063 = vmatprep.subr.mxu0 0.0
        %1064 = vmatpush1.msra.mxu0 %v1043
        %1065 = vmatprep.subr.mxu0 0.0
        %1066 = vmatpush1.msra.mxu0 %v1042
        %1067 = vmatprep.subr.mxu0 0.0
        %1068 = vmatpush1.msra.mxu0 %v1041
        %1069 = vmatprep.subr.mxu0 0.0
        %1070 = vmatpush1.msra.mxu0 %v1040
        %1071 = vmatprep.subr.mxu0 0.0
        %1072 = vmatpush1.msra.mxu0 %v1039
        %1073 = vmatprep.subr.mxu0 0.0
        %1074 = vmatpush1.msra.mxu0 %v1038
        %1075 = vmatprep.subr.mxu0 0.0
        %1076 = vmatpush1.msra.mxu0 %v1037
        %1077 = vmatprep.subr.mxu0 0.0
        %1078 = vmatpush1.msra.mxu0 %v1036
        %1079 = vmatprep.subr.mxu0 0.0
        %1080 = vmatpush1.msra.mxu0 %v1035
        %1081 = vmatprep.subr.mxu0 0.0
        %1082 = vmatpush1.msra.mxu0 %v1034
        %1083 = vmatprep.subr.mxu0 0.0
        %1084 = vmatpush1.msra.mxu0 %v1033
        %1085 = vmatprep.subr.mxu0 0.0
        %1086 = vmatpush1.msra.mxu0 %v1032
        %1087 = vmatprep.subr.mxu0 0.0
        %1088 = vmatpush2.msra.mxu0 0.0
        %1089 = vmatprep.subr.mxu0 0.0
        %1090 = vmatpush2.msra.mxu0 0.0
        %1091 = vmatprep.subr.mxu0 0.0
        %1092 = vmatpush2.msra.mxu0 0.0
        %1093 = vmatprep.subr.mxu0 0.0
        %1094 = vmatpush2.msra.mxu0 0.0
        %1095 = vmatprep.subr.mxu0 0.0
        %1096 = vmatpush2.msra.mxu0 0.0
        %1097 = vmatprep.subr.mxu0 0.0
        %1098 = vmatpush2.msra.mxu0 0.0
        %1099 = vmatprep.subr.mxu0 0.0
        %1100 = vmatpush2.msra.mxu0 0.0
        %1101 = vmatprep.subr.mxu0 0.0
        %1102 = vmatpush2.msra.mxu0 0.0
        %1103 = vmatprep.subr.mxu0 0.0
        %1104 = vmatpush2.msra.mxu0 0.0
        %1105 = vmatprep.subr.mxu0 0.0
        %1106 = vmatpush2.msra.mxu0 0.0
        %1107 = vmatprep.subr.mxu0 0.0
        %1108 = vmatpush2.msra.mxu0 0.0
        %1109 = vmatprep.subr.mxu0 0.0
        %1110 = vmatpush2.msra.mxu0 0.0
        %1111 = vmatprep.subr.mxu0 0.0
        %1112 = vmatpush2.msra.mxu0 0.0
        %1113 = vmatprep.subr.mxu0 0.0
        %1114 = vmatpush2.msra.mxu0 0.0
        %1115 = vmatprep.subr.mxu0 0.0
        %1116 = vmatpush2.msra.mxu0 0.0
        %1117 = vmatprep.subr.mxu0 0.0
        %1118 = vmatpush2.msra.mxu0 0.0
        %1119 = vmatprep.mubr.f32.mxu0 0.0
        %1120 = vmatmul.mubr.f32.gmra.mxu0 %v544
        %v1121 = vpop.f32.mrf.mxu0
        %v1122 = vadd.f32 %v1053, %v1121
        %v1123 = vpop.f32.mrf.mxu0
        %1124 = vmatprep.mubr.f32.mxu0 0.0
        %1125 = vmatmul.mubr.f32.gmra.mxu0 %v545
        %v1126 = vpop.f32.mrf.mxu0
        %v1127 = vadd.f32 %v1053, %v1126
        %v1128 = vpop.f32.mrf.mxu0
        %1129 = vmatprep.mubr.f32.mxu0 0.0
        %1130 = vmatmul.mubr.f32.gmra.mxu0 %v546
        %v1131 = vpop.f32.mrf.mxu0
        %v1132 = vadd.f32 %v1053, %v1131
        %v1133 = vpop.f32.mrf.mxu0
        %1134 = vmatprep.mubr.f32.mxu0 0.0
        %1135 = vmatmul.mubr.f32.gmra.mxu0 %v547
        %v1136 = vpop.f32.mrf.mxu0
        %v1137 = vadd.f32 %v1053, %v1136
        %v1138 = vpop.f32.mrf.mxu0
        %1139 = vmatprep.mubr.f32.mxu0 0.0
        %1140 = vmatmul.mubr.f32.gmra.mxu0 %v548
        %v1141 = vpop.f32.mrf.mxu0
        %v1142 = vadd.f32 %v1053, %v1141
        %v1143 = vpop.f32.mrf.mxu0
        %1144 = vmatprep.mubr.f32.mxu0 0.0
        %1145 = vmatmul.mubr.f32.gmra.mxu0 %v549
        %v1146 = vpop.f32.mrf.mxu0
        %v1147 = vadd.f32 %v1053, %v1146
        %v1148 = vpop.f32.mrf.mxu0
        %1149 = vmatprep.mubr.f32.mxu0 0.0
        %1150 = vmatmul.mubr.f32.gmra.mxu0 %v550
        %v1151 = vpop.f32.mrf.mxu0
        %v1152 = vadd.f32 %v1053, %v1151
        %v1153 = vpop.f32.mrf.mxu0
        %1154 = vmatprep.mubr.f32.mxu0 0.0
        %1155 = vmatmul.mubr.f32.gmra.mxu0 %v551
        %v1156 = vpop.f32.mrf.mxu0
        %v1157 = vadd.f32 %v1053, %v1156
        %v1158 = vpop.f32.mrf.mxu0
        %1159 = vdwg.mxu0
        %v1160 = vmul.f32 %v1122, 0.5
        %v1161 = vmul.f32 %v1127, 0.5
        %v1162 = vmul.f32 %v1132, 0.5
        %v1163 = vmul.f32 %v1137, 0.5
        %v1164 = vmul.f32 %v1142, 0.5
        %v1165 = vmul.f32 %v1147, 0.5
        %v1166 = vmul.f32 %v1152, 0.5
        %v1167 = vmul.f32 %v1157, 0.5
        %v1168 = vtanh.pop %v1160
        %v1169 = vtanh.pop %v1161
        %v1170 = vtanh.pop %v1162
        %v1171 = vtanh.pop %v1163
        %v1172 = vtanh.pop %v1164
        %v1173 = vtanh.pop %v1165
        %v1174 = vtanh.pop %v1166
        %v1175 = vtanh.pop %v1167
        %v1176 = vmul.f32 %v1168, 0.5
        %v1177 = vmul.f32 %v1169, 0.5
        %v1178 = vmul.f32 %v1170, 0.5
        %v1179 = vmul.f32 %v1171, 0.5
        %v1180 = vmul.f32 %v1172, 0.5
        %v1181 = vmul.f32 %v1173, 0.5
        %v1182 = vmul.f32 %v1174, 0.5
        %v1183 = vmul.f32 %v1175, 0.5
        %v1184 = vadd.f32 %v1176, 0.5
        %v1185 = vadd.f32 %v1177, 0.5
        %v1186 = vadd.f32 %v1178, 0.5
        %v1187 = vadd.f32 %v1179, 0.5
        %v1188 = vadd.f32 %v1180, 0.5
        %v1189 = vadd.f32 %v1181, 0.5
        %v1190 = vadd.f32 %v1182, 0.5
        %v1191 = vadd.f32 %v1183, 0.5
        %v1192 = vld [vmem:[#allocation7 + $0x20] sm:$0xff]
        %v1193 = vld [vmem:[#allocation7 + $0x50] sm:$0xff]
        %v1194 = vld [vmem:[#allocation7 + $0x80] sm:$0xff]
        %v1195 = vld [vmem:[#allocation7 + $0xb0] sm:$0xff]
        %v1196 = vld [vmem:[#allocation7 + $0xe0] sm:$0xff]
        %v1197 = vld [vmem:[#allocation7 + $0x110] sm:$0xff]
        %v1198 = vld [vmem:[#allocation7 + $0x140] sm:$0xff]
        %v1199 = vld [vmem:[#allocation7 + $0x170] sm:$0xff]
        %v1200 = vld [vmem:[#allocation7 + $0x1a0] sm:$0xff]
        %v1201 = vld [vmem:[#allocation7 + $0x1d0] sm:$0xff]
        %v1202 = vld [vmem:[#allocation7 + $0x200] sm:$0xff]
        %v1203 = vld [vmem:[#allocation7 + $0x230] sm:$0xff]
        %v1204 = vld [vmem:[#allocation7 + $0x260] sm:$0xff]
        %v1205 = vld [vmem:[#allocation7 + $0x290] sm:$0xff]
        %v1206 = vld [vmem:[#allocation7 + $0x2c0] sm:$0xff]
        %v1207 = vld [vmem:[#allocation7 + $0x2f0] sm:$0xff]
        %v1208 = vld [vmem:[%s4 + $0x4] sm:$0x1]
        %v1210 = vlaneseq
        %v1211 = vshrl.u32 %v1210, 7
        %v1212 = vsub.s32 0, %v1211
        %v1213 = vrot.slane %v1208, %v1212
        %1215 = vmatprep.subr.mxu0 0.0
        %1216 = vmatpush1.msra.mxu0 %v1207
        %1217 = vmatprep.subr.mxu0 0.0
        %1218 = vmatpush1.msra.mxu0 %v1206
        %1219 = vmatprep.subr.mxu0 0.0
        %1220 = vmatpush1.msra.mxu0 %v1205
        %1221 = vmatprep.subr.mxu0 0.0
        %1222 = vmatpush1.msra.mxu0 %v1204
        %1223 = vmatprep.subr.mxu0 0.0
        %1224 = vmatpush1.msra.mxu0 %v1203
        %1225 = vmatprep.subr.mxu0 0.0
        %1226 = vmatpush1.msra.mxu0 %v1202
        %1227 = vmatprep.subr.mxu0 0.0
        %1228 = vmatpush1.msra.mxu0 %v1201
        %1229 = vmatprep.subr.mxu0 0.0
        %1230 = vmatpush1.msra.mxu0 %v1200
        %1231 = vmatprep.subr.mxu0 0.0
        %1232 = vmatpush1.msra.mxu0 %v1199
        %1233 = vmatprep.subr.mxu0 0.0
        %1234 = vmatpush1.msra.mxu0 %v1198
        %1235 = vmatprep.subr.mxu0 0.0
        %1236 = vmatpush1.msra.mxu0 %v1197
        %1237 = vmatprep.subr.mxu0 0.0
        %1238 = vmatpush1.msra.mxu0 %v1196
        %1239 = vmatprep.subr.mxu0 0.0
        %1240 = vmatpush1.msra.mxu0 %v1195
        %1241 = vmatprep.subr.mxu0 0.0
        %1242 = vmatpush1.msra.mxu0 %v1194
        %1243 = vmatprep.subr.mxu0 0.0
        %1244 = vmatpush1.msra.mxu0 %v1193
        %1245 = vmatprep.subr.mxu0 0.0
        %1246 = vmatpush1.msra.mxu0 %v1192
        %1247 = vmatprep.subr.mxu0 0.0
        %1248 = vmatpush2.msra.mxu0 0.0
        %1249 = vmatprep.subr.mxu0 0.0
        %1250 = vmatpush2.msra.mxu0 0.0
        %1251 = vmatprep.subr.mxu0 0.0
        %1252 = vmatpush2.msra.mxu0 0.0
        %1253 = vmatprep.subr.mxu0 0.0
        %1254 = vmatpush2.msra.mxu0 0.0
        %1255 = vmatprep.subr.mxu0 0.0
        %1256 = vmatpush2.msra.mxu0 0.0
        %1257 = vmatprep.subr.mxu0 0.0
        %1258 = vmatpush2.msra.mxu0 0.0
        %1259 = vmatprep.subr.mxu0 0.0
        %1260 = vmatpush2.msra.mxu0 0.0
        %1261 = vmatprep.subr.mxu0 0.0
        %1262 = vmatpush2.msra.mxu0 0.0
        %1263 = vmatprep.subr.mxu0 0.0
        %1264 = vmatpush2.msra.mxu0 0.0
        %1265 = vmatprep.subr.mxu0 0.0
        %1266 = vmatpush2.msra.mxu0 0.0
        %1267 = vmatprep.subr.mxu0 0.0
        %1268 = vmatpush2.msra.mxu0 0.0
        %1269 = vmatprep.subr.mxu0 0.0
        %1270 = vmatpush2.msra.mxu0 0.0
        %1271 = vmatprep.subr.mxu0 0.0
        %1272 = vmatpush2.msra.mxu0 0.0
        %1273 = vmatprep.subr.mxu0 0.0
        %1274 = vmatpush2.msra.mxu0 0.0
        %1275 = vmatprep.subr.mxu0 0.0
        %1276 = vmatpush2.msra.mxu0 0.0
        %1277 = vmatprep.subr.mxu0 0.0
        %1278 = vmatpush2.msra.mxu0 0.0
        %1279 = vmatprep.mubr.f32.mxu0 0.0
        %1280 = vmatmul.mubr.f32.gmra.mxu0 %v544
        %v1281 = vpop.f32.mrf.mxu0
        %v1282 = vadd.f32 %v1213, %v1281
        %v1283 = vpop.f32.mrf.mxu0
        %1284 = vmatprep.mubr.f32.mxu0 0.0
        %1285 = vmatmul.mubr.f32.gmra.mxu0 %v545
        %v1286 = vpop.f32.mrf.mxu0
        %v1287 = vadd.f32 %v1213, %v1286
        %v1288 = vpop.f32.mrf.mxu0
        %1289 = vmatprep.mubr.f32.mxu0 0.0
        %1290 = vmatmul.mubr.f32.gmra.mxu0 %v546
        %v1291 = vpop.f32.mrf.mxu0
        %v1292 = vadd.f32 %v1213, %v1291
        %v1293 = vpop.f32.mrf.mxu0
        %1294 = vmatprep.mubr.f32.mxu0 0.0
        %1295 = vmatmul.mubr.f32.gmra.mxu0 %v547
        %v1296 = vpop.f32.mrf.mxu0
        %v1297 = vadd.f32 %v1213, %v1296
        %v1298 = vpop.f32.mrf.mxu0
        %1299 = vmatprep.mubr.f32.mxu0 0.0
        %1300 = vmatmul.mubr.f32.gmra.mxu0 %v548
        %v1301 = vpop.f32.mrf.mxu0
        %v1302 = vadd.f32 %v1213, %v1301
        %v1303 = vpop.f32.mrf.mxu0
        %1304 = vmatprep.mubr.f32.mxu0 0.0
        %1305 = vmatmul.mubr.f32.gmra.mxu0 %v549
        %v1306 = vpop.f32.mrf.mxu0
        %v1307 = vadd.f32 %v1213, %v1306
        %v1308 = vpop.f32.mrf.mxu0
        %1309 = vmatprep.mubr.f32.mxu0 0.0
        %1310 = vmatmul.mubr.f32.gmra.mxu0 %v550
        %v1311 = vpop.f32.mrf.mxu0
        %v1312 = vadd.f32 %v1213, %v1311
        %v1313 = vpop.f32.mrf.mxu0
        %1314 = vmatprep.mubr.f32.mxu0 0.0
        %1315 = vmatmul.mubr.f32.gmra.mxu0 %v551
        %v1316 = vpop.f32.mrf.mxu0
        %v1317 = vadd.f32 %v1213, %v1316
        %v1318 = vpop.f32.mrf.mxu0
        %1319 = vdwg.mxu0
        %v1320 = vtanh.pop %v1282
        %v1321 = vtanh.pop %v1287
        %v1322 = vtanh.pop %v1292
        %v1323 = vtanh.pop %v1297
        %v1324 = vtanh.pop %v1302
        %v1325 = vtanh.pop %v1307
        %v1326 = vtanh.pop %v1312
        %v1327 = vtanh.pop %v1317
        %v1328 = vld [vmem:[#allocation7 + $0x28] sm:$0xff]
        %v1329 = vld [vmem:[#allocation7 + $0x58] sm:$0xff]
        %v1330 = vld [vmem:[#allocation7 + $0x88] sm:$0xff]
        %v1331 = vld [vmem:[#allocation7 + $0xb8] sm:$0xff]
        %v1332 = vld [vmem:[#allocation7 + $0xe8] sm:$0xff]
        %v1333 = vld [vmem:[#allocation7 + $0x118] sm:$0xff]
        %v1334 = vld [vmem:[#allocation7 + $0x148] sm:$0xff]
        %v1335 = vld [vmem:[#allocation7 + $0x178] sm:$0xff]
        %v1336 = vld [vmem:[#allocation7 + $0x1a8] sm:$0xff]
        %v1337 = vld [vmem:[#allocation7 + $0x1d8] sm:$0xff]
        %v1338 = vld [vmem:[#allocation7 + $0x208] sm:$0xff]
        %v1339 = vld [vmem:[#allocation7 + $0x238] sm:$0xff]
        %v1340 = vld [vmem:[#allocation7 + $0x268] sm:$0xff]
        %v1341 = vld [vmem:[#allocation7 + $0x298] sm:$0xff]
        %v1342 = vld [vmem:[#allocation7 + $0x2c8] sm:$0xff]
        %v1343 = vld [vmem:[#allocation7 + $0x2f8] sm:$0xff]
        %v1344 = vld [vmem:[%s4 + $0x5] sm:$0x1]
        %v1346 = vlaneseq
        %v1347 = vshrl.u32 %v1346, 7
        %v1348 = vsub.s32 0, %v1347
        %v1349 = vrot.slane %v1344, %v1348
        %1351 = vmatprep.subr.mxu0 0.0
        %1352 = vmatpush1.msra.mxu0 %v1343
        %1353 = vmatprep.subr.mxu0 0.0
        %1354 = vmatpush1.msra.mxu0 %v1342
        %1355 = vmatprep.subr.mxu0 0.0
        %1356 = vmatpush1.msra.mxu0 %v1341
        %1357 = vmatprep.subr.mxu0 0.0
        %1358 = vmatpush1.msra.mxu0 %v1340
        %1359 = vmatprep.subr.mxu0 0.0
        %1360 = vmatpush1.msra.mxu0 %v1339
        %1361 = vmatprep.subr.mxu0 0.0
        %1362 = vmatpush1.msra.mxu0 %v1338
        %1363 = vmatprep.subr.mxu0 0.0
        %1364 = vmatpush1.msra.mxu0 %v1337
        %1365 = vmatprep.subr.mxu0 0.0
        %1366 = vmatpush1.msra.mxu0 %v1336
        %1367 = vmatprep.subr.mxu0 0.0
        %1368 = vmatpush1.msra.mxu0 %v1335
        %1369 = vmatprep.subr.mxu0 0.0
        %1370 = vmatpush1.msra.mxu0 %v1334
        %1371 = vmatprep.subr.mxu0 0.0
        %1372 = vmatpush1.msra.mxu0 %v1333
        %1373 = vmatprep.subr.mxu0 0.0
        %1374 = vmatpush1.msra.mxu0 %v1332
        %1375 = vmatprep.subr.mxu0 0.0
        %1376 = vmatpush1.msra.mxu0 %v1331
        %1377 = vmatprep.subr.mxu0 0.0
        %1378 = vmatpush1.msra.mxu0 %v1330
        %1379 = vmatprep.subr.mxu0 0.0
        %1380 = vmatpush1.msra.mxu0 %v1329
        %1381 = vmatprep.subr.mxu0 0.0
        %1382 = vmatpush1.msra.mxu0 %v1328
        %1383 = vmatprep.subr.mxu0 0.0
        %1384 = vmatpush2.msra.mxu0 0.0
        %1385 = vmatprep.subr.mxu0 0.0
        %1386 = vmatpush2.msra.mxu0 0.0
        %1387 = vmatprep.subr.mxu0 0.0
        %1388 = vmatpush2.msra.mxu0 0.0
        %1389 = vmatprep.subr.mxu0 0.0
        %1390 = vmatpush2.msra.mxu0 0.0
        %1391 = vmatprep.subr.mxu0 0.0
        %1392 = vmatpush2.msra.mxu0 0.0
        %1393 = vmatprep.subr.mxu0 0.0
        %1394 = vmatpush2.msra.mxu0 0.0
        %1395 = vmatprep.subr.mxu0 0.0
        %1396 = vmatpush2.msra.mxu0 0.0
        %1397 = vmatprep.subr.mxu0 0.0
        %1398 = vmatpush2.msra.mxu0 0.0
        %1399 = vmatprep.subr.mxu0 0.0
        %1400 = vmatpush2.msra.mxu0 0.0
        %1401 = vmatprep.subr.mxu0 0.0
        %1402 = vmatpush2.msra.mxu0 0.0
        %1403 = vmatprep.subr.mxu0 0.0
        %1404 = vmatpush2.msra.mxu0 0.0
        %1405 = vmatprep.subr.mxu0 0.0
        %1406 = vmatpush2.msra.mxu0 0.0
        %1407 = vmatprep.subr.mxu0 0.0
        %1408 = vmatpush2.msra.mxu0 0.0
        %1409 = vmatprep.subr.mxu0 0.0
        %1410 = vmatpush2.msra.mxu0 0.0
        %1411 = vmatprep.subr.mxu0 0.0
        %1412 = vmatpush2.msra.mxu0 0.0
        %1413 = vmatprep.subr.mxu0 0.0
        %1414 = vmatpush2.msra.mxu0 0.0
        %1415 = vmatprep.mubr.f32.mxu0 0.0
        %1416 = vmatmul.mubr.f32.gmra.mxu0 %v544
        %v1417 = vpop.f32.mrf.mxu0
        %v1418 = vadd.f32 %v1349, %v1417
        %v1419 = vpop.f32.mrf.mxu0
        %1420 = vmatprep.mubr.f32.mxu0 0.0
        %1421 = vmatmul.mubr.f32.gmra.mxu0 %v545
        %v1422 = vpop.f32.mrf.mxu0
        %v1423 = vadd.f32 %v1349, %v1422
        %v1424 = vpop.f32.mrf.mxu0
        %1425 = vmatprep.mubr.f32.mxu0 0.0
        %1426 = vmatmul.mubr.f32.gmra.mxu0 %v546
        %v1427 = vpop.f32.mrf.mxu0
        %v1428 = vadd.f32 %v1349, %v1427
        %v1429 = vpop.f32.mrf.mxu0
        %1430 = vmatprep.mubr.f32.mxu0 0.0
        %1431 = vmatmul.mubr.f32.gmra.mxu0 %v547
        %v1432 = vpop.f32.mrf.mxu0
        %v1433 = vadd.f32 %v1349, %v1432
        %v1434 = vpop.f32.mrf.mxu0
        %1435 = vmatprep.mubr.f32.mxu0 0.0
        %1436 = vmatmul.mubr.f32.gmra.mxu0 %v548
        %v1437 = vpop.f32.mrf.mxu0
        %v1438 = vadd.f32 %v1349, %v1437
        %v1439 = vpop.f32.mrf.mxu0
        %1440 = vmatprep.mubr.f32.mxu0 0.0
        %1441 = vmatmul.mubr.f32.gmra.mxu0 %v549
        %v1442 = vpop.f32.mrf.mxu0
        %v1443 = vadd.f32 %v1349, %v1442
        %v1444 = vpop.f32.mrf.mxu0
        %1445 = vmatprep.mubr.f32.mxu0 0.0
        %1446 = vmatmul.mubr.f32.gmra.mxu0 %v550
        %v1447 = vpop.f32.mrf.mxu0
        %v1448 = vadd.f32 %v1349, %v1447
        %v1449 = vpop.f32.mrf.mxu0
        %1450 = vmatprep.mubr.f32.mxu0 0.0
        %1451 = vmatmul.mubr.f32.gmra.mxu0 %v551
        %v1452 = vpop.f32.mrf.mxu0
        %v1453 = vadd.f32 %v1349, %v1452
        %v1454 = vpop.f32.mrf.mxu0
        %1455 = vdwg.mxu0
        %v1456 = vmul.f32 %v1418, 0.5
        %v1457 = vmul.f32 %v1423, 0.5
        %v1458 = vmul.f32 %v1428, 0.5
        %v1459 = vmul.f32 %v1433, 0.5
        %v1460 = vmul.f32 %v1438, 0.5
        %v1461 = vmul.f32 %v1443, 0.5
        %v1462 = vmul.f32 %v1448, 0.5
        %v1463 = vmul.f32 %v1453, 0.5
        %v1464 = vtanh.pop %v1456
        %v1465 = vtanh.pop %v1457
        %v1466 = vtanh.pop %v1458
        %v1467 = vtanh.pop %v1459
        %v1468 = vtanh.pop %v1460
        %v1469 = vtanh.pop %v1461
        %v1470 = vtanh.pop %v1462
        %v1471 = vtanh.pop %v1463
        %v1472 = vmul.f32 %v1464, 0.5
        %v1473 = vmul.f32 %v1465, 0.5
        %v1474 = vmul.f32 %v1466, 0.5
        %v1475 = vmul.f32 %v1467, 0.5
        %v1476 = vmul.f32 %v1468, 0.5
        %v1477 = vmul.f32 %v1469, 0.5
        %v1478 = vmul.f32 %v1470, 0.5
        %v1479 = vmul.f32 %v1471, 0.5
        %v1480 = vadd.f32 %v1472, 0.5
        %v1481 = vadd.f32 %v1473, 0.5
        %v1482 = vadd.f32 %v1474, 0.5
        %v1483 = vadd.f32 %v1475, 0.5
        %v1484 = vadd.f32 %v1476, 0.5
        %v1485 = vadd.f32 %v1477, 0.5
        %v1486 = vadd.f32 %v1478, 0.5
        %v1487 = vadd.f32 %v1479, 0.5
        %v1488 = vmul.f32 %v1184, %v1320
        %v1489 = vmul.f32 %v1185, %v1321
        %v1490 = vmul.f32 %v1186, %v1322
        %v1491 = vmul.f32 %v1187, %v1323
        %v1492 = vmul.f32 %v1188, %v1324
        %v1493 = vmul.f32 %v1189, %v1325
        %v1494 = vmul.f32 %v1190, %v1326
        %v1495 = vmul.f32 %v1191, %v1327
        %v1496 = vtanh.pop %v1488
        %v1497 = vtanh.pop %v1489
        %v1498 = vtanh.pop %v1490
        %v1499 = vtanh.pop %v1491
        %v1500 = vtanh.pop %v1492
        %v1501 = vtanh.pop %v1493
        %v1502 = vtanh.pop %v1494
        %v1503 = vtanh.pop %v1495
        %v1504 = vmul.f32 %v1480, %v1496
        %v1505 = vmul.f32 %v1481, %v1497
        %v1506 = vmul.f32 %v1482, %v1498
        %v1507 = vmul.f32 %v1483, %v1499
        %v1508 = vmul.f32 %v1484, %v1500
        %v1509 = vmul.f32 %v1485, %v1501
        %v1510 = vmul.f32 %v1486, %v1502
        %v1511 = vmul.f32 %v1487, %v1503
        %v1512 = vld [vmem:[#allocation8] sm:$0xff]
        %v1513 = vld [vmem:[#allocation8 + $0x8] sm:$0xff]
        %v1514 = vld [vmem:[#allocation8 + $0x10] sm:$0xff]
        %v1515 = vld [vmem:[#allocation8 + $0x18] sm:$0xff]
        %v1516 = vld [vmem:[#allocation8 + $0x20] sm:$0xff]
        %v1517 = vld [vmem:[#allocation8 + $0x28] sm:$0xff]
        %v1518 = vld [vmem:[#allocation8 + $0x30] sm:$0xff]
        %v1519 = vld [vmem:[#allocation8 + $0x38] sm:$0xff]
        %v1520 = vld [vmem:[#allocation8 + $0x40] sm:$0xff]
        %v1521 = vld [vmem:[#allocation8 + $0x48] sm:$0xff]
        %v1522 = vld [vmem:[#allocation8 + $0x50] sm:$0xff]
        %v1523 = vld [vmem:[#allocation8 + $0x58] sm:$0xff]
        %v1524 = vld [vmem:[#allocation8 + $0x60] sm:$0xff]
        %v1525 = vld [vmem:[#allocation8 + $0x68] sm:$0xff]
        %v1526 = vld [vmem:[#allocation8 + $0x70] sm:$0xff]
        %v1527 = vld [vmem:[#allocation8 + $0x78] sm:$0xff]
        %v1528 = vld [vmem:[#allocation10] sm:$0xff]
        %v1529 = vld [vmem:[#allocation10 + $0x8] sm:$0xff]
        %v1530 = vld [vmem:[#allocation10 + $0x10] sm:$0xff]
        %v1531 = vld [vmem:[#allocation10 + $0x18] sm:$0xff]
        %v1532 = vld [vmem:[#allocation10 + $0x20] sm:$0xff]
        %v1533 = vld [vmem:[#allocation10 + $0x28] sm:$0xff]
        %v1534 = vld [vmem:[#allocation10 + $0x30] sm:$0xff]
        %v1535 = vld [vmem:[#allocation10 + $0x38] sm:$0xff]
        %v1536 = vld [vmem:[#allocation10 + $0x40] sm:$0xff]
        %v1537 = vld [vmem:[#allocation10 + $0x48] sm:$0xff]
        %v1538 = vld [vmem:[#allocation10 + $0x50] sm:$0xff]
        %v1539 = vld [vmem:[#allocation10 + $0x58] sm:$0xff]
        %v1540 = vld [vmem:[#allocation10 + $0x60] sm:$0xff]
        %v1541 = vld [vmem:[#allocation10 + $0x68] sm:$0xff]
        %v1542 = vld [vmem:[#allocation10 + $0x70] sm:$0xff]
        %v1543 = vld [vmem:[#allocation10 + $0x78] sm:$0xff]
        %1544 = vmatprep.subr.mxu0 0.0
        %1545 = vmatpush1.msra.mxu0 %v1543
        %1546 = vmatprep.subr.mxu0 0.0
        %1547 = vmatpush1.msra.mxu0 %v1542
        %1548 = vmatprep.subr.mxu0 0.0
        %1549 = vmatpush1.msra.mxu0 %v1541
        %1550 = vmatprep.subr.mxu0 0.0
        %1551 = vmatpush1.msra.mxu0 %v1540
        %1552 = vmatprep.subr.mxu0 0.0
        %1553 = vmatpush1.msra.mxu0 %v1539
        %1554 = vmatprep.subr.mxu0 0.0
        %1555 = vmatpush1.msra.mxu0 %v1538
        %1556 = vmatprep.subr.mxu0 0.0
        %1557 = vmatpush1.msra.mxu0 %v1537
        %1558 = vmatprep.subr.mxu0 0.0
        %1559 = vmatpush1.msra.mxu0 %v1536
        %1560 = vmatprep.subr.mxu0 0.0
        %1561 = vmatpush1.msra.mxu0 %v1535
        %1562 = vmatprep.subr.mxu0 0.0
        %1563 = vmatpush1.msra.mxu0 %v1534
        %1564 = vmatprep.subr.mxu0 0.0
        %1565 = vmatpush1.msra.mxu0 %v1533
        %1566 = vmatprep.subr.mxu0 0.0
        %1567 = vmatpush1.msra.mxu0 %v1532
        %1568 = vmatprep.subr.mxu0 0.0
        %1569 = vmatpush1.msra.mxu0 %v1531
        %1570 = vmatprep.subr.mxu0 0.0
        %1571 = vmatpush1.msra.mxu0 %v1530
        %1572 = vmatprep.subr.mxu0 0.0
        %1573 = vmatpush1.msra.mxu0 %v1529
        %1574 = vmatprep.subr.mxu0 0.0
        %1575 = vmatpush1.msra.mxu0 %v1528
        %1576 = vmatprep.subr.mxu0 0.0
        %1577 = vmatpush2.msra.mxu0 0.0
        %1578 = vmatprep.subr.mxu0 0.0
        %1579 = vmatpush2.msra.mxu0 0.0
        %1580 = vmatprep.subr.mxu0 0.0
        %1581 = vmatpush2.msra.mxu0 0.0
        %1582 = vmatprep.subr.mxu0 0.0
        %1583 = vmatpush2.msra.mxu0 0.0
        %1584 = vmatprep.subr.mxu0 0.0
        %1585 = vmatpush2.msra.mxu0 0.0
        %1586 = vmatprep.subr.mxu0 0.0
        %1587 = vmatpush2.msra.mxu0 0.0
        %1588 = vmatprep.subr.mxu0 0.0
        %1589 = vmatpush2.msra.mxu0 0.0
        %1590 = vmatprep.subr.mxu0 0.0
        %1591 = vmatpush2.msra.mxu0 0.0
        %1592 = vmatprep.subr.mxu0 0.0
        %1593 = vmatpush2.msra.mxu0 0.0
        %1594 = vmatprep.subr.mxu0 0.0
        %1595 = vmatpush2.msra.mxu0 0.0
        %1596 = vmatprep.subr.mxu0 0.0
        %1597 = vmatpush2.msra.mxu0 0.0
        %1598 = vmatprep.subr.mxu0 0.0
        %1599 = vmatpush2.msra.mxu0 0.0
        %1600 = vmatprep.subr.mxu0 0.0
        %1601 = vmatpush2.msra.mxu0 0.0
        %1602 = vmatprep.subr.mxu0 0.0
        %1603 = vmatpush2.msra.mxu0 0.0
        %1604 = vmatprep.subr.mxu0 0.0
        %1605 = vmatpush2.msra.mxu0 0.0
        %1606 = vmatprep.subr.mxu0 0.0
        %1607 = vmatpush2.msra.mxu0 0.0
        %1608 = vmatprep.mubr.f32.mxu0 0.0
        %1609 = vmatmul.mubr.f32.gmra.mxu0 %v1504
        %v1610 = vpop.f32.mrf.mxu0
        %v1611 = vadd.f32 0.0, %v1610
        %v1612 = vpop.f32.mrf.mxu0
        %1613 = vmatprep.mubr.f32.mxu0 0.0
        %1614 = vmatmul.mubr.f32.gmra.mxu0 %v1505
        %v1615 = vpop.f32.mrf.mxu0
        %v1616 = vadd.f32 0.0, %v1615
        %v1617 = vpop.f32.mrf.mxu0
        %1618 = vmatprep.mubr.f32.mxu0 0.0
        %1619 = vmatmul.mubr.f32.gmra.mxu0 %v1506
        %v1620 = vpop.f32.mrf.mxu0
        %v1621 = vadd.f32 0.0, %v1620
        %v1622 = vpop.f32.mrf.mxu0
        %1623 = vmatprep.mubr.f32.mxu0 0.0
        %1624 = vmatmul.mubr.f32.gmra.mxu0 %v1507
        %v1625 = vpop.f32.mrf.mxu0
        %v1626 = vadd.f32 0.0, %v1625
        %v1627 = vpop.f32.mrf.mxu0
        %1628 = vmatprep.mubr.f32.mxu0 0.0
        %1629 = vmatmul.mubr.f32.gmra.mxu0 %v1508
        %v1630 = vpop.f32.mrf.mxu0
        %v1631 = vadd.f32 0.0, %v1630
        %v1632 = vpop.f32.mrf.mxu0
        %1633 = vmatprep.mubr.f32.mxu0 0.0
        %1634 = vmatmul.mubr.f32.gmra.mxu0 %v1509
        %v1635 = vpop.f32.mrf.mxu0
        %v1636 = vadd.f32 0.0, %v1635
        %v1637 = vpop.f32.mrf.mxu0
        %1638 = vmatprep.mubr.f32.mxu0 0.0
        %1639 = vmatmul.mubr.f32.gmra.mxu0 %v1510
        %v1640 = vpop.f32.mrf.mxu0
        %v1641 = vadd.f32 0.0, %v1640
        %v1642 = vpop.f32.mrf.mxu0
        %1643 = vmatprep.mubr.f32.mxu0 0.0
        %1644 = vmatmul.mubr.f32.gmra.mxu0 %v1511
        %v1645 = vpop.f32.mrf.mxu0
        %v1646 = vadd.f32 0.0, %v1645
        %v1647 = vpop.f32.mrf.mxu0
        %1648 = vdwg.mxu0
        %1649 = vmatprep.subr.mxu0 0.0
        %1650 = vmatpush1.msra.mxu0 %v1527
        %1651 = vmatprep.subr.mxu0 0.0
        %1652 = vmatpush1.msra.mxu0 %v1526
        %1653 = vmatprep.subr.mxu0 0.0
        %1654 = vmatpush1.msra.mxu0 %v1525
        %1655 = vmatprep.subr.mxu0 0.0
        %1656 = vmatpush1.msra.mxu0 %v1524
        %1657 = vmatprep.subr.mxu0 0.0
        %1658 = vmatpush1.msra.mxu0 %v1523
        %1659 = vmatprep.subr.mxu0 0.0
        %1660 = vmatpush1.msra.mxu0 %v1522
        %1661 = vmatprep.subr.mxu0 0.0
        %1662 = vmatpush1.msra.mxu0 %v1521
        %1663 = vmatprep.subr.mxu0 0.0
        %1664 = vmatpush1.msra.mxu0 %v1520
        %1665 = vmatprep.subr.mxu0 0.0
        %1666 = vmatpush1.msra.mxu0 %v1519
        %1667 = vmatprep.subr.mxu0 0.0
        %1668 = vmatpush1.msra.mxu0 %v1518
        %1669 = vmatprep.subr.mxu0 0.0
        %1670 = vmatpush1.msra.mxu0 %v1517
        %1671 = vmatprep.subr.mxu0 0.0
        %1672 = vmatpush1.msra.mxu0 %v1516
        %1673 = vmatprep.subr.mxu0 0.0
        %1674 = vmatpush1.msra.mxu0 %v1515
        %1675 = vmatprep.subr.mxu0 0.0
        %1676 = vmatpush1.msra.mxu0 %v1514
        %1677 = vmatprep.subr.mxu0 0.0
        %1678 = vmatpush1.msra.mxu0 %v1513
        %1679 = vmatprep.subr.mxu0 0.0
        %1680 = vmatpush1.msra.mxu0 %v1512
        %1681 = vmatprep.subr.mxu0 0.0
        %1682 = vmatpush2.msra.mxu0 0.0
        %1683 = vmatprep.subr.mxu0 0.0
        %1684 = vmatpush2.msra.mxu0 0.0
        %1685 = vmatprep.subr.mxu0 0.0
        %1686 = vmatpush2.msra.mxu0 0.0
        %1687 = vmatprep.subr.mxu0 0.0
        %1688 = vmatpush2.msra.mxu0 0.0
        %1689 = vmatprep.subr.mxu0 0.0
        %1690 = vmatpush2.msra.mxu0 0.0
        %1691 = vmatprep.subr.mxu0 0.0
        %1692 = vmatpush2.msra.mxu0 0.0
        %1693 = vmatprep.subr.mxu0 0.0
        %1694 = vmatpush2.msra.mxu0 0.0
        %1695 = vmatprep.subr.mxu0 0.0
        %1696 = vmatpush2.msra.mxu0 0.0
        %1697 = vmatprep.subr.mxu0 0.0
        %1698 = vmatpush2.msra.mxu0 0.0
        %1699 = vmatprep.subr.mxu0 0.0
        %1700 = vmatpush2.msra.mxu0 0.0
        %1701 = vmatprep.subr.mxu0 0.0
        %1702 = vmatpush2.msra.mxu0 0.0
        %1703 = vmatprep.subr.mxu0 0.0
        %1704 = vmatpush2.msra.mxu0 0.0
        %1705 = vmatprep.subr.mxu0 0.0
        %1706 = vmatpush2.msra.mxu0 0.0
        %1707 = vmatprep.subr.mxu0 0.0
        %1708 = vmatpush2.msra.mxu0 0.0
        %1709 = vmatprep.subr.mxu0 0.0
        %1710 = vmatpush2.msra.mxu0 0.0
        %1711 = vmatprep.subr.mxu0 0.0
        %1712 = vmatpush2.msra.mxu0 0.0
        %1713 = vmatprep.mubr.f32.mxu0 0.0
        %1714 = vmatmul.mubr.f32.gmra.mxu0 %v1024
        %v1715 = vpop.f32.mrf.mxu0
        %v1716 = vadd.f32 %v1611, %v1715
        %v1717 = vpop.f32.mrf.mxu0
        %1718 = vmatprep.mubr.f32.mxu0 0.0
        %1719 = vmatmul.mubr.f32.gmra.mxu0 %v1025
        %v1720 = vpop.f32.mrf.mxu0
        %v1721 = vadd.f32 %v1616, %v1720
        %v1722 = vpop.f32.mrf.mxu0
        %1723 = vmatprep.mubr.f32.mxu0 0.0
        %1724 = vmatmul.mubr.f32.gmra.mxu0 %v1026
        %v1725 = vpop.f32.mrf.mxu0
        %v1726 = vadd.f32 %v1621, %v1725
        %v1727 = vpop.f32.mrf.mxu0
        %1728 = vmatprep.mubr.f32.mxu0 0.0
        %1729 = vmatmul.mubr.f32.gmra.mxu0 %v1027
        %v1730 = vpop.f32.mrf.mxu0
        %v1731 = vadd.f32 %v1626, %v1730
        %v1732 = vpop.f32.mrf.mxu0
        %1733 = vmatprep.mubr.f32.mxu0 0.0
        %1734 = vmatmul.mubr.f32.gmra.mxu0 %v1028
        %v1735 = vpop.f32.mrf.mxu0
        %v1736 = vadd.f32 %v1631, %v1735
        %v1737 = vpop.f32.mrf.mxu0
        %1738 = vmatprep.mubr.f32.mxu0 0.0
        %1739 = vmatmul.mubr.f32.gmra.mxu0 %v1029
        %v1740 = vpop.f32.mrf.mxu0
        %v1741 = vadd.f32 %v1636, %v1740
        %v1742 = vpop.f32.mrf.mxu0
        %1743 = vmatprep.mubr.f32.mxu0 0.0
        %1744 = vmatmul.mubr.f32.gmra.mxu0 %v1030
        %v1745 = vpop.f32.mrf.mxu0
        %v1746 = vadd.f32 %v1641, %v1745
        %v1747 = vpop.f32.mrf.mxu0
        %1748 = vmatprep.mubr.f32.mxu0 0.0
        %1749 = vmatmul.mubr.f32.gmra.mxu0 %v1031
        %v1750 = vpop.f32.mrf.mxu0
        %v1751 = vadd.f32 %v1646, %v1750
        %v1752 = vpop.f32.mrf.mxu0
        %1753 = vdwg.mxu0
        %v1754 = vld [vmem:[%s7] sm:$0x1]
        %v1756 = vlaneseq
        %v1757 = vshrl.u32 %v1756, 7
        %v1758 = vsub.s32 0, %v1757
        %v1759 = vrot.slane %v1754, %v1758
        %v1761 = vadd.f32 %v1716, %v1759
        %v1762 = vadd.f32 %v1721, %v1759
        %v1763 = vadd.f32 %v1726, %v1759
        %v1764 = vadd.f32 %v1731, %v1759
        %v1765 = vadd.f32 %v1736, %v1759
        %v1766 = vadd.f32 %v1741, %v1759
        %v1767 = vadd.f32 %v1746, %v1759
        %v1768 = vadd.f32 %v1751, %v1759
        %v1769 = vmul.f32 %v1761, 0.5
        %v1770 = vmul.f32 %v1762, 0.5
        %v1771 = vmul.f32 %v1763, 0.5
        %v1772 = vmul.f32 %v1764, 0.5
        %v1773 = vmul.f32 %v1765, 0.5
        %v1774 = vmul.f32 %v1766, 0.5
        %v1775 = vmul.f32 %v1767, 0.5
        %v1776 = vmul.f32 %v1768, 0.5
        %v1777 = vtanh.pop %v1769
        %v1778 = vtanh.pop %v1770
        %v1779 = vtanh.pop %v1771
        %v1780 = vtanh.pop %v1772
        %v1781 = vtanh.pop %v1773
        %v1782 = vtanh.pop %v1774
        %v1783 = vtanh.pop %v1775
        %v1784 = vtanh.pop %v1776
        %v1785 = vmul.f32 %v1777, 0.5
        %v1786 = vmul.f32 %v1778, 0.5
        %v1787 = vmul.f32 %v1779, 0.5
        %v1788 = vmul.f32 %v1780, 0.5
        %v1789 = vmul.f32 %v1781, 0.5
        %v1790 = vmul.f32 %v1782, 0.5
        %v1791 = vmul.f32 %v1783, 0.5
        %v1792 = vmul.f32 %v1784, 0.5
        %v1793 = vadd.f32 %v1785, 0.5
        %v1794 = vadd.f32 %v1786, 0.5
        %v1795 = vadd.f32 %v1787, 0.5
        %v1796 = vadd.f32 %v1788, 0.5
        %v1797 = vadd.f32 %v1789, 0.5
        %v1798 = vadd.f32 %v1790, 0.5
        %v1799 = vadd.f32 %v1791, 0.5
        %v1800 = vadd.f32 %v1792, 0.5
        %1801 = vst [vmem:[%s381] sm:$0xff] %v1793
        %1802 = vst [vmem:[%s381 + $0x8] sm:$0xff] %v1794
        %1803 = vst [vmem:[%s381 + $0x10] sm:$0xff] %v1795
        %1804 = vst [vmem:[%s381 + $0x18] sm:$0xff] %v1796
        %1805 = vst [vmem:[%s381 + $0x20] sm:$0xff] %v1797
        %1806 = vst [vmem:[%s381 + $0x28] sm:$0xff] %v1798
        %1807 = vst [vmem:[%s381 + $0x30] sm:$0xff] %v1799
        %1808 = vst [vmem:[%s381 + $0x38] sm:$0xff] %v1800
        %s1809 = sand.u32 %s208, 1
        %s1810 = scalar_lea.sflag [#allocation4], %s1809
        %s1811 = sand.u32 %s208, 1
        %s1812 = smul.addr %s1811, 64
        %s1813 = scalar_lea.vmem [#allocation11], %s1812
        // Predicated region
        $region73: #{tpu_custom_call.1} parent=51 // pred_check
          %p1814 = pneg %p218
        $region74: #{tpu_custom_call.1} parent=51 // pred_check_branch
          %1816 = sbr.rel (%p1814) target = $region76
        $region75: #{tpu_custom_call.1} parent=51 // pred_region
          %s1817 = smul.u32 8, %s27
          %s1819 = ssub.s32 1024, 1024
          %1820 = vsyncadd %s1810, %s1819
          %s1821 = smul.addr %s1817, 128
          %s1822 = scalar_lea.hbm %s8, %s1821
          %s1823 = sshll.u32 %s1813, 4
          %s1824 = int_to_ptr.vmem [resolvable:$true] %s1823
          %1829 = dma.vmem_to_hbm [thread:$0]  %s1824, 1024, %s1822, %s1810, 128, 128, 8
        $region76: #{tpu_custom_call.1} parent=51 // pred_fallthru
          _
      $region52: #{tpu_custom_call.1} parent=5 // pred_fallthru
        _
      %p1830 = scmp.le.s32.totalorder 2, %s22
      // Predicated region
      $region77: #{tpu_custom_call.1} parent=5 // pred_check
        %p1831 = pneg %p1830
      $region78: #{tpu_custom_call.1} parent=5 // pred_check_branch
        %1833 = sbr.rel (%p1831) target = $region80
      $region79: #{tpu_custom_call.1} parent=5 // pred_region
        %s1834 = ssub.s32 %s22, 2
        // Predicated region
        $region81: #{tpu_custom_call.1} parent=79 // pred_check
          %p1835 = pneg %p224
        $region82: #{tpu_custom_call.1} parent=79 // pred_check_branch
          %1837 = sbr.rel (%p1835) target = $region84
        $region83: #{tpu_custom_call.1} parent=79 // pred_region
          %s1838 = sand.u32 %s209, 1
          %s1839 = scalar_lea.sflag [#allocation4], %s1838
          %s1840 = sand.u32 %s209, 1
          %s1841 = smul.addr %s1840, 64
          %s1842 = scalar_lea.vmem [#allocation11], %s1841
          %1843 = dma.done %s1839, 1024
        $region84: #{tpu_custom_call.1} parent=79 // pred_fallthru
          _
      $region80: #{tpu_custom_call.1} parent=5 // pred_fallthru
        _
    $region6: #{tpu_custom_call.1} parent=1 // loop_footer
      %s26 = sadd.s32 1, %s22
    $region7: #{tpu_custom_call.1} parent=1 // loop_footer_branch
      %21 = sbr.rel target = $region3
    $region8: #{tpu_custom_call.1} parent=1 // loop_exit
      _
    %1844 = vsyncpa [#allocation3], 1
    %s1845 = scalar_lea.sflag [#allocation3], 1
    %1846 = vsyncpa %s1845, 1
    %1847 = vsyncpa [#allocation6], 1
    %1848 = vsyncpa [#allocation9], 1
    %1849 = vsyncpa [#allocation4], 1
    %s1850 = scalar_lea.sflag [#allocation4], 1
    %1851 = vsyncpa %s1850, 1

</llo_original>
